<compile_context>
chip_gen: v6e
topology: v6e:2x2x1
jax: 0.10.0
libtpu: 0.0.40
codegen_flags: <defaults>
</compile_context>

<pallas_src>
import jax
import jax.numpy as jnp
from jax.experimental import pallas as pl
from jax.experimental.pallas import tpu as pltpu

# ---------------- config (small, consistent with the module) ----------------
PATCH = 16
IMG = 64                        # 64x64 image -> 4x4 = 16 patch tokens
IN_CH = 3
EMBED = 64                      # scaled-down ViT embed dim (vit_base uses 768)
HEADS = 4
HEAD_DIM = EMBED // HEADS
MLP = 4 * EMBED
DEPTH = 12
FEAT_DIM = 12                   # fc_pose output (feat_dim=12)
POSE_PAD = 128                  # lane-dense pose-head slab width
N_TOK = (IMG // PATCH) ** 2
PATCH_K = IN_CH * PATCH * PATCH
LN_EPS = 1e-6

IMAGENET_MEAN = (0.485, 0.456, 0.406)
IMAGENET_STD = (0.229, 0.224, 0.225)


# ------------------------------ kernel helpers -------------------------------
def _layernorm(x, g, b):
    mu = jnp.mean(x, axis=-1, keepdims=True)
    var = jnp.mean(jnp.square(x - mu), axis=-1, keepdims=True)
    return (x - mu) * jax.lax.rsqrt(var + LN_EPS) * g + b


# ------------------------------ fused Pallas kernel --------------------------
def fused_featformer_kernel(
        # per-batch input
        patches_ref,
        # constant, fully resident weights
        wpe_ref, bpe_ref,
        ln1g_ref, ln1b_ref, wqkv_ref, bqkv_ref, wproj_ref, bproj_ref,
        ln2g_ref, ln2b_ref, w1_ref, b1_ref, w2_ref, b2_ref,
        wpose_ref, bpose_ref,
        # output
        out_ref):
    f32 = jnp.float32
    bf16 = jnp.bfloat16
    scale = HEAD_DIM ** -0.5

    # ---- patch embed: 16x16/16 conv as patches @ W' + b' (ImageNet norm folded) ----
    x = jnp.dot(patches_ref[0], wpe_ref[...],
                preferred_element_type=f32) + bpe_ref[...]           # [N, D] f32

    def block(d, x):
        # ------------------------------ attention ------------------------------
        h = _layernorm(x, ln1g_ref[d], ln1b_ref[d]).astype(bf16)
        # fused QKV: one lane-dense [N,64]@[64,192] MXU op
        qkv = jnp.dot(h, wqkv_ref[d], preferred_element_type=f32) + bqkv_ref[d]
        # split into head-batched [H, N, Hd] via static lane slices (tiny)
        q = jnp.stack([qkv[:, 0 * EMBED + i * HEAD_DIM: 0 * EMBED + (i + 1) * HEAD_DIM]
                       for i in range(HEADS)], axis=0).astype(bf16)
        k = jnp.stack([qkv[:, 1 * EMBED + i * HEAD_DIM: 1 * EMBED + (i + 1) * HEAD_DIM]
                       for i in range(HEADS)], axis=0).astype(bf16)
        v = jnp.stack([qkv[:, 2 * EMBED + i * HEAD_DIM: 2 * EMBED + (i + 1) * HEAD_DIM]
                       for i in range(HEADS)], axis=0).astype(bf16)

        s = jnp.einsum('hqd,hkd->hqk', q, k,
                       preferred_element_type=f32) * scale           # [H, N, N] f32
        s = s - jnp.max(s, axis=-1, keepdims=True)
        p = jnp.exp(s)
        p = p * pl.reciprocal(jnp.sum(p, axis=-1, keepdims=True), approx=True)
        ctx = jnp.einsum('hqk,hkd->hqd', p.astype(bf16), v,
                         preferred_element_type=f32)                 # [H, N, Hd]
        # head-concat back to lane-dense [N, D], then ONE output projection
        ctx = jnp.concatenate([ctx[i] for i in range(HEADS)], axis=-1)
        proj = jnp.dot(ctx.astype(bf16), wproj_ref[d],
                       preferred_element_type=f32) + bproj_ref[d]
        x = x + proj

        # -------------------------------- MLP --------------------------------
        h2 = _layernorm(x, ln2g_ref[d], ln2b_ref[d]).astype(bf16)
        ff = jnp.dot(h2, w1_ref[d], preferred_element_type=f32) + b1_ref[d]
        # TODO(synk): PyTorch nn.GELU is erf-exact; tanh approximation used here.
        ff = jax.nn.gelu(ff, approximate=True)
        ff = jnp.dot(ff.astype(bf16), w2_ref[d],
                     preferred_element_type=f32) + b2_ref[d]
        return x + ff

    x = jax.lax.fori_loop(0, DEPTH, block, x)

    # ---- AdaptiveAvgPool2d((1, D)) == mean over tokens, then fc_pose ----
    pooled = jnp.mean(x, axis=0, keepdims=True)                      # [1, D]
    pose = jnp.dot(pooled.astype(bf16), wpose_ref[...],
                   preferred_element_type=f32) + bpose_ref[...]      # [1, 128]
    # lane-dense, sublane-full store; wrapper slices row 0 / first FEAT_DIM lanes
    out_ref[...] = jnp.broadcast_to(pose.reshape(1, 1, POSE_PAD), (1, 8, POSE_PAD))


# ------------------------------ pallas_call wrapper ---------------------------
def _const_spec(a):
    return pl.BlockSpec(a.shape, lambda b, _n=a.ndim: (0,) * _n)


@jax.jit
def featformer_forward(x, params):
    """Default FeatFormer.forward path: feature_maps=None, predict=[B, 12]."""
    B = x.shape[0]
    f32, bf16 = jnp.float32, jnp.bfloat16

    # Fold ImageNet normalization into the patch-embed affine (trace-time algebra):
    #   ((p - mean)/std) @ W + b == p @ (W / std[:, None]) + (b - (mean/std) @ W)
    mean_vec = jnp.repeat(jnp.array(IMAGENET_MEAN, f32), PATCH * PATCH)   # [PATCH_K]
    std_vec = jnp.repeat(jnp.array(IMAGENET_STD, f32), PATCH * PATCH)
    w_pe = params['w_patch'] / std_vec[:, None]                           # [PATCH_K, D]
    b_pe = params['b_patch'] - mean_vec[None, :] @ w_pe                   # [1, D]

    # Pose head padded to a lane-dense 128-wide slab (sliced back to 12 below).
    w_pose = jnp.zeros((EMBED, POSE_PAD), f32).at[:, :FEAT_DIM].set(params['w_pose'])
    b_pose = jnp.zeros((1, POSE_PAD), f32).at[:, :FEAT_DIM].set(params['b_pose'])

    # Patch extraction glue: NCHW -> [B, N, C*P*P] (channel-major within a patch,
    # matching the conv-weight flatten order); cast to bf16 in the wrapper.
    g = IMG // PATCH
    patches = x.reshape(B, IN_CH, g, PATCH, g, PATCH)
    patches = patches.transpose(0, 2, 4, 1, 3, 5).reshape(B, N_TOK, PATCH_K)
    patches = patches.astype(bf16)

    inputs = [
        patches,
        w_pe.astype(bf16), b_pe,
        params['ln1_g'], params['ln1_b'],
        params['wqkv'].astype(bf16), params['bqkv'],
        params['wproj'].astype(bf16), params['bproj'],
        params['ln2_g'], params['ln2_b'],
        params['w1'].astype(bf16), params['b1'],
        params['w2'].astype(bf16), params['b2'],
        w_pose.astype(bf16), b_pose,
    ]

    in_specs = ([pl.BlockSpec((1, N_TOK, PATCH_K), lambda b: (b, 0, 0))]
                + [_const_spec(a) for a in inputs[1:]])

    # Total resident state (all weights + one patch block + output) is < 2 MB:
    # far under every generation's scoped VMEM default, so no vmem_limit_bytes.
    out = pl.pallas_call(
        fused_featformer_kernel,
        out_shape=jax.ShapeDtypeStruct((B, 8, POSE_PAD), jnp.float32),
        grid=(B,),                                    # batch axis only
        in_specs=in_specs,
        out_specs=pl.BlockSpec((1, 8, POSE_PAD), lambda b: (b, 0, 0)),
        compiler_params=pltpu.CompilerParams(
            # 'parallel' lets v7x shard batch across both TensorCores; on
            # v5e/v6e the constant weight blocks keep the same block index so
            # they are DMA'd only once.
            dimension_semantics=("parallel",)),
    )(*inputs)
    return out[:, 0, :FEAT_DIM]


# ------------------------------ params & main --------------------------------
def init_params(key):
    """Deterministic random params; QKV fused, all layouts lane-dense."""
    counter = [0]

    def nrm(shape, scale=0.02):
        counter[0] += 1
        k = jax.random.fold_in(key, counter[0])
        return (scale * jax.random.normal(k, shape)).astype(jnp.float32)

    return {
        # conv weight [D, C, P, P] flattened & transposed -> [C*P*P, D]
        'w_patch': nrm((PATCH_K, EMBED)),
        'b_patch': nrm((1, EMBED)),
        # fc_pose: weight [feat_dim, D] transposed -> [D, feat_dim]
        'w_pose': nrm((EMBED, FEAT_DIM)),
        'b_pose': nrm((1, FEAT_DIM)),
        # transformer blocks, stacked over depth; QKV fused into one 192-wide
        # slab (columns ordered q|k|v, head-major within each).
        'ln1_g': jnp.ones((DEPTH, 1, EMBED), jnp.float32),
        'ln1_b': jnp.zeros((DEPTH, 1, EMBED), jnp.float32),
        'wqkv': nrm((DEPTH, EMBED, 3 * EMBED)),
        'bqkv': nrm((DEPTH, 1, 3 * EMBED)),
        'wproj': nrm((DEPTH, EMBED, EMBED)),
        'bproj': nrm((DEPTH, 1, EMBED)),
        'ln2_g': jnp.ones((DEPTH, 1, EMBED), jnp.float32),
        'ln2_b': jnp.zeros((DEPTH, 1, EMBED), jnp.float32),
        'w1': nrm((DEPTH, EMBED, MLP)),
        'b1': nrm((DEPTH, 1, MLP)),
        'w2': nrm((DEPTH, MLP, EMBED)),
        'b2': nrm((DEPTH, 1, EMBED)),
    }


if __name__ == "__main__":
    key = jax.random.PRNGKey(0)
    k_params, k_x = jax.random.split(key)
    params = init_params(k_params)
    x = jax.random.uniform(k_x, (2, IN_CH, IMG, IMG), dtype=jnp.float32)  # NCHW blob

    predict = featformer_forward(x, params)
    predict = jax.block_until_ready(predict)

    assert predict.shape == (2, FEAT_DIM), predict.shape
    assert bool(jnp.all(jnp.isfinite(predict)))
    print("KERNEL_OK")
</pallas_src>

<mosaic_0001>
module attributes {stable_mosaic.version = 11 : i64} {
  func.func @fused_featformer_kernel(%arg0: i32, %arg1: memref<1x16x768xbf16, #tpu.memory_space<vmem>>, %arg2: memref<768x64xbf16, #tpu.memory_space<vmem>>, %arg3: memref<1x64xf32, #tpu.memory_space<vmem>>, %arg4: memref<12x1x64xf32, #tpu.memory_space<vmem>>, %arg5: memref<12x1x64xf32, #tpu.memory_space<vmem>>, %arg6: memref<12x64x192xbf16, #tpu.memory_space<vmem>>, %arg7: memref<12x1x192xf32, #tpu.memory_space<vmem>>, %arg8: memref<12x64x64xbf16, #tpu.memory_space<vmem>>, %arg9: memref<12x1x64xf32, #tpu.memory_space<vmem>>, %arg10: memref<12x1x64xf32, #tpu.memory_space<vmem>>, %arg11: memref<12x1x64xf32, #tpu.memory_space<vmem>>, %arg12: memref<12x64x256xbf16, #tpu.memory_space<vmem>>, %arg13: memref<12x1x256xf32, #tpu.memory_space<vmem>>, %arg14: memref<12x256x64xbf16, #tpu.memory_space<vmem>>, %arg15: memref<12x1x64xf32, #tpu.memory_space<vmem>>, %arg16: memref<64x128xbf16, #tpu.memory_space<vmem>>, %arg17: memref<1x128xf32, #tpu.memory_space<vmem>>, %arg18: memref<1x8x128xf32, #tpu.memory_space<vmem>>) attributes {dimension_semantics = [#tpu.dimension_semantics<parallel>], iteration_bounds = array<i64: 2>, scalar_prefetch = 0 : i64, scratch_operands = 0 : i64, tpu.core_type = #tpu.core_type<tc>, window_params = [{transform_indices = @transform_0, window_bounds = array<i64: 1, 16, 768>}, {pipeline_mode = #tpu.pipeline_mode<synchronous>, transform_indices = @transform_1, window_bounds = array<i64: 768, 64>}, {pipeline_mode = #tpu.pipeline_mode<synchronous>, transform_indices = @transform_2, window_bounds = array<i64: 1, 64>}, {pipeline_mode = #tpu.pipeline_mode<synchronous>, transform_indices = @transform_3, window_bounds = array<i64: 12, 1, 64>}, {pipeline_mode = #tpu.pipeline_mode<synchronous>, transform_indices = @transform_4, window_bounds = array<i64: 12, 1, 64>}, {pipeline_mode = #tpu.pipeline_mode<synchronous>, transform_indices = @transform_5, window_bounds = array<i64: 12, 64, 192>}, {pipeline_mode = #tpu.pipeline_mode<synchronous>, transform_indices = @transform_6, window_bounds = array<i64: 12, 1, 192>}, {pipeline_mode = #tpu.pipeline_mode<synchronous>, transform_indices = @transform_7, window_bounds = array<i64: 12, 64, 64>}, {pipeline_mode = #tpu.pipeline_mode<synchronous>, transform_indices = @transform_8, window_bounds = array<i64: 12, 1, 64>}, {pipeline_mode = #tpu.pipeline_mode<synchronous>, transform_indices = @transform_9, window_bounds = array<i64: 12, 1, 64>}, {pipeline_mode = #tpu.pipeline_mode<synchronous>, transform_indices = @transform_10, window_bounds = array<i64: 12, 1, 64>}, {pipeline_mode = #tpu.pipeline_mode<synchronous>, transform_indices = @transform_11, window_bounds = array<i64: 12, 64, 256>}, {pipeline_mode = #tpu.pipeline_mode<synchronous>, transform_indices = @transform_12, window_bounds = array<i64: 12, 1, 256>}, {pipeline_mode = #tpu.pipeline_mode<synchronous>, transform_indices = @transform_13, window_bounds = array<i64: 12, 256, 64>}, {pipeline_mode = #tpu.pipeline_mode<synchronous>, transform_indices = @transform_14, window_bounds = array<i64: 12, 1, 64>}, {pipeline_mode = #tpu.pipeline_mode<synchronous>, transform_indices = @transform_15, window_bounds = array<i64: 64, 128>}, {pipeline_mode = #tpu.pipeline_mode<synchronous>, transform_indices = @transform_16, window_bounds = array<i64: 1, 128>}, {transform_indices = @transform_17, window_bounds = array<i64: 1, 8, 128>}]} {
    %c0 = arith.constant 0 : index
    %c0_0 = arith.constant 0 : index
    %c0_1 = arith.constant 0 : index
    %0 = vector.load %arg1[%c0, %c0_0, %c0_1] : memref<1x16x768xbf16, #tpu.memory_space<vmem>>, vector<1x16x768xbf16>
    %1 = vector.shape_cast %0 : vector<1x16x768xbf16> to vector<16x768xbf16>
    %c0_2 = arith.constant 0 : index
    %c0_3 = arith.constant 0 : index
    %2 = vector.load %arg2[%c0_2, %c0_3] : memref<768x64xbf16, #tpu.memory_space<vmem>>, vector<768x64xbf16>
    %cst = arith.constant dense<0.000000e+00> : vector<16x64xf32>
    %3 = tpu.matmul %1, %2, %cst {dimension_numbers = #tpu.dot_dimension_numbers<[1], [0], [0], [1], [0, 0, 1, 1], [], []>} : vector<16x768xbf16>, vector<768x64xbf16>, vector<16x64xf32> -> vector<16x64xf32>
    %c0_4 = arith.constant 0 : index
    %c0_5 = arith.constant 0 : index
    %4 = vector.load %arg3[%c0_4, %c0_5] : memref<1x64xf32, #tpu.memory_space<vmem>>, vector<1x64xf32>
    %5 = vector.broadcast %4 : vector<1x64xf32> to vector<16x64xf32>
    %6 = arith.addf %3, %5 : vector<16x64xf32>
    %c0_i32 = arith.constant 0 : i32
    %c12_i32 = arith.constant 12 : i32
    %7 = arith.addi %c0_i32, %c12_i32 : i32
    %c1_i32 = arith.constant 1 : i32
    %8 = scf.for %arg19 = %c0_i32 to %7 step %c1_i32 iter_args(%arg20 = %6) -> (vector<16x64xf32>)  : i32 {
      %22 = arith.index_cast %arg19 : i32 to index
      %c0_17 = arith.constant 0 : index
      %c0_18 = arith.constant 0 : index
      %23 = vector.load %arg4[%22, %c0_17, %c0_18] : memref<12x1x64xf32, #tpu.memory_space<vmem>>, vector<1x1x64xf32>
      %24 = vector.shape_cast %23 : vector<1x1x64xf32> to vector<1x64xf32>
      %25 = arith.index_cast %arg19 : i32 to index
      %c0_19 = arith.constant 0 : index
      %c0_20 = arith.constant 0 : index
      %26 = vector.load %arg5[%25, %c0_19, %c0_20] : memref<12x1x64xf32, #tpu.memory_space<vmem>>, vector<1x1x64xf32>
      %27 = vector.shape_cast %26 : vector<1x1x64xf32> to vector<1x64xf32>
      %cst_21 = arith.constant dense<0.000000e+00> : vector<16xf32>
      %28 = vector.multi_reduction <add>, %arg20, %cst_21 [1] : vector<16x64xf32> to vector<16xf32>
      %29 = vector.shape_cast %28 : vector<16xf32> to vector<16x1xf32>
      %cst_22 = arith.constant 6.400000e+01 : f32
      %30 = vector.broadcast %cst_22 : f32 to vector<16x1xf32>
      %31 = arith.divf %29, %30 : vector<16x1xf32>
      %32 = vector.broadcast %31 : vector<16x1xf32> to vector<16x64xf32>
      %33 = arith.subf %arg20, %32 : vector<16x64xf32>
      %34 = arith.mulf %33, %33 : vector<16x64xf32>
      %cst_23 = arith.constant dense<0.000000e+00> : vector<16xf32>
      %35 = vector.multi_reduction <add>, %34, %cst_23 [1] : vector<16x64xf32> to vector<16xf32>
      %36 = vector.shape_cast %35 : vector<16xf32> to vector<16x1xf32>
      %cst_24 = arith.constant 6.400000e+01 : f32
      %37 = vector.broadcast %cst_24 : f32 to vector<16x1xf32>
      %38 = arith.divf %36, %37 : vector<16x1xf32>
      %39 = vector.broadcast %31 : vector<16x1xf32> to vector<16x64xf32>
      %40 = arith.subf %arg20, %39 : vector<16x64xf32>
      %cst_25 = arith.constant 9.99999997E-7 : f32
      %41 = vector.broadcast %cst_25 : f32 to vector<16x1xf32>
      %42 = arith.addf %38, %41 : vector<16x1xf32>
      %43 = math.rsqrt %42 : vector<16x1xf32>
      %44 = vector.broadcast %43 : vector<16x1xf32> to vector<16x64xf32>
      %45 = arith.mulf %40, %44 : vector<16x64xf32>
      %46 = vector.broadcast %24 : vector<1x64xf32> to vector<16x64xf32>
      %47 = arith.mulf %45, %46 : vector<16x64xf32>
      %48 = vector.broadcast %27 : vector<1x64xf32> to vector<16x64xf32>
      %49 = arith.addf %47, %48 : vector<16x64xf32>
      %50 = arith.truncf %49 : vector<16x64xf32> to vector<16x64xbf16>
      %51 = arith.index_cast %arg19 : i32 to index
      %c0_26 = arith.constant 0 : index
      %c0_27 = arith.constant 0 : index
      %52 = vector.load %arg6[%51, %c0_26, %c0_27] : memref<12x64x192xbf16, #tpu.memory_space<vmem>>, vector<1x64x192xbf16>
      %53 = vector.shape_cast %52 : vector<1x64x192xbf16> to vector<64x192xbf16>
      %cst_28 = arith.constant dense<0.000000e+00> : vector<16x192xf32>
      %54 = tpu.matmul %50, %53, %cst_28 {dimension_numbers = #tpu.dot_dimension_numbers<[1], [0], [0], [1], [0, 0, 1, 1], [], []>} : vector<16x64xbf16>, vector<64x192xbf16>, vector<16x192xf32> -> vector<16x192xf32>
      %55 = arith.index_cast %arg19 : i32 to index
      %c0_29 = arith.constant 0 : index
      %c0_30 = arith.constant 0 : index
      %56 = vector.load %arg7[%55, %c0_29, %c0_30] : memref<12x1x192xf32, #tpu.memory_space<vmem>>, vector<1x1x192xf32>
      %57 = vector.shape_cast %56 : vector<1x1x192xf32> to vector<1x192xf32>
      %58 = vector.broadcast %57 : vector<1x192xf32> to vector<16x192xf32>
      %59 = arith.addf %54, %58 : vector<16x192xf32>
      %60 = vector.extract_strided_slice %59 {offsets = [0, 0], sizes = [16, 16], strides = [1, 1]} : vector<16x192xf32> to vector<16x16xf32>
      %61 = vector.extract_strided_slice %59 {offsets = [0, 16], sizes = [16, 16], strides = [1, 1]} : vector<16x192xf32> to vector<16x16xf32>
      %62 = vector.extract_strided_slice %59 {offsets = [0, 32], sizes = [16, 16], strides = [1, 1]} : vector<16x192xf32> to vector<16x16xf32>
      %63 = vector.extract_strided_slice %59 {offsets = [0, 48], sizes = [16, 16], strides = [1, 1]} : vector<16x192xf32> to vector<16x16xf32>
      %64 = vector.shape_cast %60 : vector<16x16xf32> to vector<1x16x16xf32>
      %65 = vector.shape_cast %61 : vector<16x16xf32> to vector<1x16x16xf32>
      %66 = vector.shape_cast %62 : vector<16x16xf32> to vector<1x16x16xf32>
      %67 = vector.shape_cast %63 : vector<16x16xf32> to vector<1x16x16xf32>
      %68 = tpu.concatenate %64, %65, %66, %67 in 0 : vector<1x16x16xf32>, vector<1x16x16xf32>, vector<1x16x16xf32>, vector<1x16x16xf32> -> vector<4x16x16xf32>
      %69 = arith.truncf %68 : vector<4x16x16xf32> to vector<4x16x16xbf16>
      %70 = vector.extract_strided_slice %59 {offsets = [0, 64], sizes = [16, 16], strides = [1, 1]} : vector<16x192xf32> to vector<16x16xf32>
      %71 = vector.extract_strided_slice %59 {offsets = [0, 80], sizes = [16, 16], strides = [1, 1]} : vector<16x192xf32> to vector<16x16xf32>
      %72 = vector.extract_strided_slice %59 {offsets = [0, 96], sizes = [16, 16], strides = [1, 1]} : vector<16x192xf32> to vector<16x16xf32>
      %73 = vector.extract_strided_slice %59 {offsets = [0, 112], sizes = [16, 16], strides = [1, 1]} : vector<16x192xf32> to vector<16x16xf32>
      %74 = vector.shape_cast %70 : vector<16x16xf32> to vector<1x16x16xf32>
      %75 = vector.shape_cast %71 : vector<16x16xf32> to vector<1x16x16xf32>
      %76 = vector.shape_cast %72 : vector<16x16xf32> to vector<1x16x16xf32>
      %77 = vector.shape_cast %73 : vector<16x16xf32> to vector<1x16x16xf32>
      %78 = tpu.concatenate %74, %75, %76, %77 in 0 : vector<1x16x16xf32>, vector<1x16x16xf32>, vector<1x16x16xf32>, vector<1x16x16xf32> -> vector<4x16x16xf32>
      %79 = arith.truncf %78 : vector<4x16x16xf32> to vector<4x16x16xbf16>
      %80 = vector.extract_strided_slice %59 {offsets = [0, 128], sizes = [16, 16], strides = [1, 1]} : vector<16x192xf32> to vector<16x16xf32>
      %81 = vector.extract_strided_slice %59 {offsets = [0, 144], sizes = [16, 16], strides = [1, 1]} : vector<16x192xf32> to vector<16x16xf32>
      %82 = vector.extract_strided_slice %59 {offsets = [0, 160], sizes = [16, 16], strides = [1, 1]} : vector<16x192xf32> to vector<16x16xf32>
      %83 = vector.extract_strided_slice %59 {offsets = [0, 176], sizes = [16, 16], strides = [1, 1]} : vector<16x192xf32> to vector<16x16xf32>
      %84 = vector.shape_cast %80 : vector<16x16xf32> to vector<1x16x16xf32>
      %85 = vector.shape_cast %81 : vector<16x16xf32> to vector<1x16x16xf32>
      %86 = vector.shape_cast %82 : vector<16x16xf32> to vector<1x16x16xf32>
      %87 = vector.shape_cast %83 : vector<16x16xf32> to vector<1x16x16xf32>
      %88 = tpu.concatenate %84, %85, %86, %87 in 0 : vector<1x16x16xf32>, vector<1x16x16xf32>, vector<1x16x16xf32>, vector<1x16x16xf32> -> vector<4x16x16xf32>
      %89 = arith.truncf %88 : vector<4x16x16xf32> to vector<4x16x16xbf16>
      "tpu.trace_start"() <{level = 10 : i32, message = "hqd,hkd->hqk"}> : () -> ()
      %cst_31 = arith.constant dense<0.000000e+00> : vector<4x16x16xf32>
      %90 = tpu.matmul %69, %79, %cst_31 {dimension_numbers = #tpu.dot_dimension_numbers<[2], [2], [1], [1], [0, 0, 0, 1, 1, 1], [0], [0]>} : vector<4x16x16xbf16>, vector<4x16x16xbf16>, vector<4x16x16xf32> -> vector<4x16x16xf32>
      "tpu.trace_stop"() : () -> ()
      %cst_32 = arith.constant 2.500000e-01 : f32
      %91 = vector.broadcast %cst_32 : f32 to vector<4x16x16xf32>
      %92 = arith.mulf %90, %91 : vector<4x16x16xf32>
      %cst_33 = arith.constant dense<0xFF800000> : vector<4x16xf32>
      %93 = vector.multi_reduction <maximumf>, %92, %cst_33 [2] : vector<4x16x16xf32> to vector<4x16xf32>
      %94 = vector.shape_cast %93 : vector<4x16xf32> to vector<4x16x1xf32>
      %95 = vector.broadcast %94 : vector<4x16x1xf32> to vector<4x16x16xf32>
      %96 = arith.subf %92, %95 : vector<4x16x16xf32>
      %97 = math.exp %96 : vector<4x16x16xf32>
      %cst_34 = arith.constant dense<0.000000e+00> : vector<4x16xf32>
      %98 = vector.multi_reduction <add>, %97, %cst_34 [2] : vector<4x16x16xf32> to vector<4x16xf32>
      %99 = vector.shape_cast %98 : vector<4x16xf32> to vector<4x16x1xf32>
      %100 = tpu.reciprocal %99 {approx = true} : vector<4x16x1xf32> -> vector<4x16x1xf32>
      %101 = vector.broadcast %100 : vector<4x16x1xf32> to vector<4x16x16xf32>
      %102 = arith.mulf %97, %101 : vector<4x16x16xf32>
      %103 = arith.truncf %102 : vector<4x16x16xf32> to vector<4x16x16xbf16>
      "tpu.trace_start"() <{level = 10 : i32, message = "hqk,hkd->hqd"}> : () -> ()
      %cst_35 = arith.constant dense<0.000000e+00> : vector<4x16x16xf32>
      %104 = tpu.matmul %103, %89, %cst_35 {dimension_numbers = #tpu.dot_dimension_numbers<[2], [1], [1], [2], [0, 0, 0, 1, 1, 2], [0], [0]>} : vector<4x16x16xbf16>, vector<4x16x16xbf16>, vector<4x16x16xf32> -> vector<4x16x16xf32>
      "tpu.trace_stop"() : () -> ()
      %105 = vector.extract_strided_slice %104 {offsets = [0, 0, 0], sizes = [1, 16, 16], strides = [1, 1, 1]} : vector<4x16x16xf32> to vector<1x16x16xf32>
      %106 = vector.shape_cast %105 : vector<1x16x16xf32> to vector<16x16xf32>
      %107 = vector.extract_strided_slice %104 {offsets = [1, 0, 0], sizes = [1, 16, 16], strides = [1, 1, 1]} : vector<4x16x16xf32> to vector<1x16x16xf32>
      %108 = vector.shape_cast %107 : vector<1x16x16xf32> to vector<16x16xf32>
      %109 = vector.extract_strided_slice %104 {offsets = [2, 0, 0], sizes = [1, 16, 16], strides = [1, 1, 1]} : vector<4x16x16xf32> to vector<1x16x16xf32>
      %110 = vector.shape_cast %109 : vector<1x16x16xf32> to vector<16x16xf32>
      %111 = vector.extract_strided_slice %104 {offsets = [3, 0, 0], sizes = [1, 16, 16], strides = [1, 1, 1]} : vector<4x16x16xf32> to vector<1x16x16xf32>
      %112 = vector.shape_cast %111 : vector<1x16x16xf32> to vector<16x16xf32>
      %113 = tpu.concatenate %106, %108, %110, %112 in 1 : vector<16x16xf32>, vector<16x16xf32>, vector<16x16xf32>, vector<16x16xf32> -> vector<16x64xf32>
      %114 = arith.truncf %113 : vector<16x64xf32> to vector<16x64xbf16>
      %115 = arith.index_cast %arg19 : i32 to index
      %c0_36 = arith.constant 0 : index
      %c0_37 = arith.constant 0 : index
      %116 = vector.load %arg8[%115, %c0_36, %c0_37] : memref<12x64x64xbf16, #tpu.memory_space<vmem>>, vector<1x64x64xbf16>
      %117 = vector.shape_cast %116 : vector<1x64x64xbf16> to vector<64x64xbf16>
      %cst_38 = arith.constant dense<0.000000e+00> : vector<16x64xf32>
      %118 = tpu.matmul %114, %117, %cst_38 {dimension_numbers = #tpu.dot_dimension_numbers<[1], [0], [0], [1], [0, 0, 1, 1], [], []>} : vector<16x64xbf16>, vector<64x64xbf16>, vector<16x64xf32> -> vector<16x64xf32>
      %119 = arith.index_cast %arg19 : i32 to index
      %c0_39 = arith.constant 0 : index
      %c0_40 = arith.constant 0 : index
      %120 = vector.load %arg9[%119, %c0_39, %c0_40] : memref<12x1x64xf32, #tpu.memory_space<vmem>>, vector<1x1x64xf32>
      %121 = vector.shape_cast %120 : vector<1x1x64xf32> to vector<1x64xf32>
      %122 = vector.broadcast %121 : vector<1x64xf32> to vector<16x64xf32>
      %123 = arith.addf %118, %122 : vector<16x64xf32>
      %124 = arith.addf %arg20, %123 : vector<16x64xf32>
      %125 = arith.index_cast %arg19 : i32 to index
      %c0_41 = arith.constant 0 : index
      %c0_42 = arith.constant 0 : index
      %126 = vector.load %arg10[%125, %c0_41, %c0_42] : memref<12x1x64xf32, #tpu.memory_space<vmem>>, vector<1x1x64xf32>
      %127 = vector.shape_cast %126 : vector<1x1x64xf32> to vector<1x64xf32>
      %128 = arith.index_cast %arg19 : i32 to index
      %c0_43 = arith.constant 0 : index
      %c0_44 = arith.constant 0 : index
      %129 = vector.load %arg11[%128, %c0_43, %c0_44] : memref<12x1x64xf32, #tpu.memory_space<vmem>>, vector<1x1x64xf32>
      %130 = vector.shape_cast %129 : vector<1x1x64xf32> to vector<1x64xf32>
      %cst_45 = arith.constant dense<0.000000e+00> : vector<16xf32>
      %131 = vector.multi_reduction <add>, %124, %cst_45 [1] : vector<16x64xf32> to vector<16xf32>
      %132 = vector.shape_cast %131 : vector<16xf32> to vector<16x1xf32>
      %cst_46 = arith.constant 6.400000e+01 : f32
      %133 = vector.broadcast %cst_46 : f32 to vector<16x1xf32>
      %134 = arith.divf %132, %133 : vector<16x1xf32>
      %135 = vector.broadcast %134 : vector<16x1xf32> to vector<16x64xf32>
      %136 = arith.subf %124, %135 : vector<16x64xf32>
      %137 = arith.mulf %136, %136 : vector<16x64xf32>
      %cst_47 = arith.constant dense<0.000000e+00> : vector<16xf32>
      %138 = vector.multi_reduction <add>, %137, %cst_47 [1] : vector<16x64xf32> to vector<16xf32>
      %139 = vector.shape_cast %138 : vector<16xf32> to vector<16x1xf32>
      %cst_48 = arith.constant 6.400000e+01 : f32
      %140 = vector.broadcast %cst_48 : f32 to vector<16x1xf32>
      %141 = arith.divf %139, %140 : vector<16x1xf32>
      %142 = vector.broadcast %134 : vector<16x1xf32> to vector<16x64xf32>
      %143 = arith.subf %124, %142 : vector<16x64xf32>
      %cst_49 = arith.constant 9.99999997E-7 : f32
      %144 = vector.broadcast %cst_49 : f32 to vector<16x1xf32>
      %145 = arith.addf %141, %144 : vector<16x1xf32>
      %146 = math.rsqrt %145 : vector<16x1xf32>
      %147 = vector.broadcast %146 : vector<16x1xf32> to vector<16x64xf32>
      %148 = arith.mulf %143, %147 : vector<16x64xf32>
      %149 = vector.broadcast %127 : vector<1x64xf32> to vector<16x64xf32>
      %150 = arith.mulf %148, %149 : vector<16x64xf32>
      %151 = vector.broadcast %130 : vector<1x64xf32> to vector<16x64xf32>
      %152 = arith.addf %150, %151 : vector<16x64xf32>
      %153 = arith.truncf %152 : vector<16x64xf32> to vector<16x64xbf16>
      %154 = arith.index_cast %arg19 : i32 to index
      %c0_50 = arith.constant 0 : index
      %c0_51 = arith.constant 0 : index
      %155 = vector.load %arg12[%154, %c0_50, %c0_51] : memref<12x64x256xbf16, #tpu.memory_space<vmem>>, vector<1x64x256xbf16>
      %156 = vector.shape_cast %155 : vector<1x64x256xbf16> to vector<64x256xbf16>
      %cst_52 = arith.constant dense<0.000000e+00> : vector<16x256xf32>
      %157 = tpu.matmul %153, %156, %cst_52 {dimension_numbers = #tpu.dot_dimension_numbers<[1], [0], [0], [1], [0, 0, 1, 1], [], []>} : vector<16x64xbf16>, vector<64x256xbf16>, vector<16x256xf32> -> vector<16x256xf32>
      %158 = arith.index_cast %arg19 : i32 to index
      %c0_53 = arith.constant 0 : index
      %c0_54 = arith.constant 0 : index
      %159 = vector.load %arg13[%158, %c0_53, %c0_54] : memref<12x1x256xf32, #tpu.memory_space<vmem>>, vector<1x1x256xf32>
      %160 = vector.shape_cast %159 : vector<1x1x256xf32> to vector<1x256xf32>
      %161 = vector.broadcast %160 : vector<1x256xf32> to vector<16x256xf32>
      %162 = arith.addf %157, %161 : vector<16x256xf32>
      %163 = arith.mulf %162, %162 : vector<16x256xf32>
      %164 = arith.mulf %162, %163 : vector<16x256xf32>
      %cst_55 = arith.constant 4.471500e-02 : f32
      %165 = vector.broadcast %cst_55 : f32 to vector<16x256xf32>
      %166 = arith.mulf %165, %164 : vector<16x256xf32>
      %167 = arith.addf %162, %166 : vector<16x256xf32>
      %cst_56 = arith.constant 0.797884583 : f32
      %168 = vector.broadcast %cst_56 : f32 to vector<16x256xf32>
      %169 = arith.mulf %168, %167 : vector<16x256xf32>
      %170 = math.tanh %169 : vector<16x256xf32>
      %cst_57 = arith.constant 1.000000e+00 : f32
      %171 = vector.broadcast %cst_57 : f32 to vector<16x256xf32>
      %172 = arith.addf %171, %170 : vector<16x256xf32>
      %cst_58 = arith.constant 5.000000e-01 : f32
      %173 = vector.broadcast %cst_58 : f32 to vector<16x256xf32>
      %174 = arith.mulf %173, %172 : vector<16x256xf32>
      %175 = arith.mulf %162, %174 : vector<16x256xf32>
      %176 = arith.truncf %175 : vector<16x256xf32> to vector<16x256xbf16>
      %177 = arith.index_cast %arg19 : i32 to index
      %c0_59 = arith.constant 0 : index
      %c0_60 = arith.constant 0 : index
      %178 = vector.load %arg14[%177, %c0_59, %c0_60] : memref<12x256x64xbf16, #tpu.memory_space<vmem>>, vector<1x256x64xbf16>
      %179 = vector.shape_cast %178 : vector<1x256x64xbf16> to vector<256x64xbf16>
      %cst_61 = arith.constant dense<0.000000e+00> : vector<16x64xf32>
      %180 = tpu.matmul %176, %179, %cst_61 {dimension_numbers = #tpu.dot_dimension_numbers<[1], [0], [0], [1], [0, 0, 1, 1], [], []>} : vector<16x256xbf16>, vector<256x64xbf16>, vector<16x64xf32> -> vector<16x64xf32>
      %181 = arith.index_cast %arg19 : i32 to index
      %c0_62 = arith.constant 0 : index
      %c0_63 = arith.constant 0 : index
      %182 = vector.load %arg15[%181, %c0_62, %c0_63] : memref<12x1x64xf32, #tpu.memory_space<vmem>>, vector<1x1x64xf32>
      %183 = vector.shape_cast %182 : vector<1x1x64xf32> to vector<1x64xf32>
      %184 = vector.broadcast %183 : vector<1x64xf32> to vector<16x64xf32>
      %185 = arith.addf %180, %184 : vector<16x64xf32>
      %186 = arith.addf %124, %185 : vector<16x64xf32>
      scf.yield %186 : vector<16x64xf32>
    }
    %c12_i32_6 = arith.constant 12 : i32
    %cst_7 = arith.constant dense<0.000000e+00> : vector<64xf32>
    %9 = vector.multi_reduction <add>, %8, %cst_7 [0] : vector<16x64xf32> to vector<64xf32>
    %10 = vector.shape_cast %9 : vector<64xf32> to vector<1x64xf32>
    %cst_8 = arith.constant 1.600000e+01 : f32
    %11 = vector.broadcast %cst_8 : f32 to vector<1x64xf32>
    %12 = arith.divf %10, %11 : vector<1x64xf32>
    %13 = arith.truncf %12 : vector<1x64xf32> to vector<1x64xbf16>
    %c0_9 = arith.constant 0 : index
    %c0_10 = arith.constant 0 : index
    %14 = vector.load %arg16[%c0_9, %c0_10] : memref<64x128xbf16, #tpu.memory_space<vmem>>, vector<64x128xbf16>
    %cst_11 = arith.constant dense<0.000000e+00> : vector<1x128xf32>
    %15 = tpu.matmul %13, %14, %cst_11 {dimension_numbers = #tpu.dot_dimension_numbers<[1], [0], [0], [1], [0, 0, 1, 1], [], []>} : vector<1x64xbf16>, vector<64x128xbf16>, vector<1x128xf32> -> vector<1x128xf32>
    %c0_12 = arith.constant 0 : index
    %c0_13 = arith.constant 0 : index
    %16 = vector.load %arg17[%c0_12, %c0_13] : memref<1x128xf32, #tpu.memory_space<vmem>>, vector<1x128xf32>
    %17 = arith.addf %15, %16 : vector<1x128xf32>
    %18 = vector.shape_cast %17 : vector<1x128xf32> to vector<1x1x128xf32>
    %19 = vector.shape_cast %18 : vector<1x1x128xf32> to vector<1x1x128xf32>
    %20 = vector.broadcast %19 : vector<1x1x128xf32> to vector<1x8x128xf32>
    %c0_14 = arith.constant 0 : index
    %c0_15 = arith.constant 0 : index
    %c0_16 = arith.constant 0 : index
    %21 = vector.load %arg18[%c0_14, %c0_15, %c0_16] : memref<1x8x128xf32, #tpu.memory_space<vmem>>, vector<1x8x128xf32>
    tpu.vector_store %arg18[%c0_14, %c0_15, %c0_16], %20 {strides = array<i32>} : memref<1x8x128xf32, #tpu.memory_space<vmem>>, vector<1x8x128xf32>,
    return
  }
  func.func @transform_0(%arg0: i32) -> (i32, i32, i32) {
    %c0_i32 = arith.constant 0 : i32
    %c0_i32_0 = arith.constant 0 : i32
    %c0_i32_1 = arith.constant 0 : i32
    return %arg0, %c0_i32, %c0_i32_0 : i32, i32, i32
  }
  func.func @transform_1(%arg0: i32) -> (i32, i32) {
    %c0_i32 = arith.constant 0 : i32
    %c0_i32_0 = arith.constant 0 : i32
    %c0_i32_1 = arith.constant 0 : i32
    return %c0_i32, %c0_i32_0 : i32, i32
  }
  func.func @transform_2(%arg0: i32) -> (i32, i32) {
    %c0_i32 = arith.constant 0 : i32
    %c0_i32_0 = arith.constant 0 : i32
    %c0_i32_1 = arith.constant 0 : i32
    return %c0_i32, %c0_i32_0 : i32, i32
  }
  func.func @transform_3(%arg0: i32) -> (i32, i32, i32) {
    %c0_i32 = arith.constant 0 : i32
    %c0_i32_0 = arith.constant 0 : i32
    %c0_i32_1 = arith.constant 0 : i32
    %c0_i32_2 = arith.constant 0 : i32
    return %c0_i32, %c0_i32_0, %c0_i32_1 : i32, i32, i32
  }
  func.func @transform_4(%arg0: i32) -> (i32, i32, i32) {
    %c0_i32 = arith.constant 0 : i32
    %c0_i32_0 = arith.constant 0 : i32
    %c0_i32_1 = arith.constant 0 : i32
    %c0_i32_2 = arith.constant 0 : i32
    return %c0_i32, %c0_i32_0, %c0_i32_1 : i32, i32, i32
  }
  func.func @transform_5(%arg0: i32) -> (i32, i32, i32) {
    %c0_i32 = arith.constant 0 : i32
    %c0_i32_0 = arith.constant 0 : i32
    %c0_i32_1 = arith.constant 0 : i32
    %c0_i32_2 = arith.constant 0 : i32
    return %c0_i32, %c0_i32_0, %c0_i32_1 : i32, i32, i32
  }
  func.func @transform_6(%arg0: i32) -> (i32, i32, i32) {
    %c0_i32 = arith.constant 0 : i32
    %c0_i32_0 = arith.constant 0 : i32
    %c0_i32_1 = arith.constant 0 : i32
    %c0_i32_2 = arith.constant 0 : i32
    return %c0_i32, %c0_i32_0, %c0_i32_1 : i32, i32, i32
  }
  func.func @transform_7(%arg0: i32) -> (i32, i32, i32) {
    %c0_i32 = arith.constant 0 : i32
    %c0_i32_0 = arith.constant 0 : i32
    %c0_i32_1 = arith.constant 0 : i32
    %c0_i32_2 = arith.constant 0 : i32
    return %c0_i32, %c0_i32_0, %c0_i32_1 : i32, i32, i32
  }
  func.func @transform_8(%arg0: i32) -> (i32, i32, i32) {
    %c0_i32 = arith.constant 0 : i32
    %c0_i32_0 = arith.constant 0 : i32
    %c0_i32_1 = arith.constant 0 : i32
    %c0_i32_2 = arith.constant 0 : i32
    return %c0_i32, %c0_i32_0, %c0_i32_1 : i32, i32, i32
  }
  func.func @transform_9(%arg0: i32) -> (i32, i32, i32) {
    %c0_i32 = arith.constant 0 : i32
    %c0_i32_0 = arith.constant 0 : i32
    %c0_i32_1 = arith.constant 0 : i32
    %c0_i32_2 = arith.constant 0 : i32
    return %c0_i32, %c0_i32_0, %c0_i32_1 : i32, i32, i32
  }
  func.func @transform_10(%arg0: i32) -> (i32, i32, i32) {
    %c0_i32 = arith.constant 0 : i32
    %c0_i32_0 = arith.constant 0 : i32
    %c0_i32_1 = arith.constant 0 : i32
    %c0_i32_2 = arith.constant 0 : i32
    return %c0_i32, %c0_i32_0, %c0_i32_1 : i32, i32, i32
  }
  func.func @transform_11(%arg0: i32) -> (i32, i32, i32) {
    %c0_i32 = arith.constant 0 : i32
    %c0_i32_0 = arith.constant 0 : i32
    %c0_i32_1 = arith.constant 0 : i32
    %c0_i32_2 = arith.constant 0 : i32
    return %c0_i32, %c0_i32_0, %c0_i32_1 : i32, i32, i32
  }
  func.func @transform_12(%arg0: i32) -> (i32, i32, i32) {
    %c0_i32 = arith.constant 0 : i32
    %c0_i32_0 = arith.constant 0 : i32
    %c0_i32_1 = arith.constant 0 : i32
    %c0_i32_2 = arith.constant 0 : i32
    return %c0_i32, %c0_i32_0, %c0_i32_1 : i32, i32, i32
  }
  func.func @transform_13(%arg0: i32) -> (i32, i32, i32) {
    %c0_i32 = arith.constant 0 : i32
    %c0_i32_0 = arith.constant 0 : i32
    %c0_i32_1 = arith.constant 0 : i32
    %c0_i32_2 = arith.constant 0 : i32
    return %c0_i32, %c0_i32_0, %c0_i32_1 : i32, i32, i32
  }
  func.func @transform_14(%arg0: i32) -> (i32, i32, i32) {
    %c0_i32 = arith.constant 0 : i32
    %c0_i32_0 = arith.constant 0 : i32
    %c0_i32_1 = arith.constant 0 : i32
    %c0_i32_2 = arith.constant 0 : i32
    return %c0_i32, %c0_i32_0, %c0_i32_1 : i32, i32, i32
  }
  func.func @transform_15(%arg0: i32) -> (i32, i32) {
    %c0_i32 = arith.constant 0 : i32
    %c0_i32_0 = arith.constant 0 : i32
    %c0_i32_1 = arith.constant 0 : i32
    return %c0_i32, %c0_i32_0 : i32, i32
  }
  func.func @transform_16(%arg0: i32) -> (i32, i32) {
    %c0_i32 = arith.constant 0 : i32
    %c0_i32_0 = arith.constant 0 : i32
    %c0_i32_1 = arith.constant 0 : i32
    return %c0_i32, %c0_i32_0 : i32, i32
  }
  func.func @transform_17(%arg0: i32) -> (i32, i32, i32) {
    %c0_i32 = arith.constant 0 : i32
    %c0_i32_0 = arith.constant 0 : i32
    %c0_i32_1 = arith.constant 0 : i32
    return %arg0, %c0_i32, %c0_i32_0 : i32, i32, i32
  }
}

</mosaic_0001>

<llo_original>
// kernel: div.5
$region0: #{div.5}
  %s0 = inlined_call_operand.vmem [shape: f32[3,256], index: 0, kind: input, shape index: {}]
  %s1 = inlined_call_operand.vmem [shape: f32[768], index: 1, kind: output, shape index: {}]
  $region1: #{div.5} parent=0
    #allocation0 [shape = 'u8[8192]{0}', space=vmem, size = 0x2000, scoped, tag = 'scoped mem for input reshape']
    %s3 = sshll.u32 1, 4
    %s4 = ssub.s32 %s3, 1
    %s5 = scalar_lea.vmem %s0, 4
    %v6 = vld [vmem:[%s5] sm:%s4]
    %s7 = scalar_lea.vmem [#allocation0], 8
    %8 = vst [vmem:[%s7] sm:%s4] %v6
    %v9 = vld [vmem:[%s0] sm:%s4]
    %10 = vst [vmem:[#allocation0] sm:%s4] %v9
    %v11 = vld [vmem:[#allocation0] sm:$0x7]
    %12 = vst [vmem:[%s1] ss:$2 sm:$0x7] %v11
    %s13 = scalar_lea.vmem [#allocation0], 8
    %v14 = vld [vmem:[%s13] sm:$0x7]
    %s15 = scalar_lea.vmem %s1, 1
    %16 = vst [vmem:[%s15] ss:$2 sm:$0x7] %v14

// kernel: featformer_forward.1
$region0: #{featformer_forward.1}
  #allocation0 [shape = 'u32[]', space=smem, size = 0x4, offset = 0x4, fixed_abs, tag = 'smem constant byte address 0x4 - core index']
  #allocation1 [shape = 'u32[144,128]{1,0:T(1,128)}', space=vmem, size = 0x12000, scoped, tag = 'internal scratch']
  %s0 = inlined_call_operand.vmem [shape: bf16[2,16,768], index: 0, kind: input, shape index: {}]
  %s1 = inlined_call_operand.vmem [shape: bf16[768,64], index: 1, kind: input, shape index: {}]
  %s2 = inlined_call_operand.vmem [shape: f32[1,64], index: 2, kind: input, shape index: {}]
  %s3 = inlined_call_operand.vmem [shape: f32[12,1,64], index: 3, kind: input, shape index: {}]
  %s4 = inlined_call_operand.vmem [shape: f32[12,1,64], index: 4, kind: input, shape index: {}]
  %s5 = inlined_call_operand.vmem [shape: bf16[12,64,192], index: 5, kind: input, shape index: {}]
  %s6 = inlined_call_operand.vmem [shape: f32[12,1,192], index: 6, kind: input, shape index: {}]
  %s7 = inlined_call_operand.vmem [shape: bf16[12,64,64], index: 7, kind: input, shape index: {}]
  %s8 = inlined_call_operand.vmem [shape: f32[12,1,64], index: 8, kind: input, shape index: {}]
  %s9 = inlined_call_operand.vmem [shape: f32[12,1,64], index: 9, kind: input, shape index: {}]
  %s10 = inlined_call_operand.vmem [shape: f32[12,1,64], index: 10, kind: input, shape index: {}]
  %s11 = inlined_call_operand.vmem [shape: bf16[12,64,256], index: 11, kind: input, shape index: {}]
  %s12 = inlined_call_operand.vmem [shape: f32[12,1,256], index: 12, kind: input, shape index: {}]
  %s13 = inlined_call_operand.vmem [shape: bf16[12,256,64], index: 13, kind: input, shape index: {}]
  %s14 = inlined_call_operand.vmem [shape: f32[12,1,64], index: 14, kind: input, shape index: {}]
  %s15 = inlined_call_operand.vmem [shape: bf16[64,128], index: 15, kind: input, shape index: {}]
  %s16 = inlined_call_operand.vmem [shape: f32[1,128], index: 16, kind: input, shape index: {}]
  %s17 = inlined_call_operand.vmem [shape: f32[2,8,128], index: 17, kind: output, shape index: {}]
  %s18 = sld [smem:[#allocation0]]
  $region108: #{featformer_forward.1} parent=0
    _
  %s20 = ssub.s32 1, %s18
  %s21 = scalar_select 0, %s20, %s18
  loop: start=0, step=1, limit=4
  $region2: #{featformer_forward.1} parent=0 // loop_pre_header
    _
  $region3: #{featformer_forward.1} parent=0 // loop_header
    %s23 = sphi 0, %s27
    %p24 = scmp.ge.s32.totalorder %s23, 4
    %s33 = sphi 0, %s35
    %s36 = sphi 0, %s33
    %s37 = sphi 0, %s36
    %s53 = sphi 0, %s37
    %s57 = sphi 0, %s57
    %s59 = sphi 0, %s57
    %s60 = sphi 0, %s59
    %s74 = sphi 0, %s60
    %s78 = sphi 0, %s78
    %s80 = sphi 0, %s78
    %s81 = sphi 0, %s80
    %s95 = sphi 0, %s81
    %s99 = sphi 0, %s99
    %s101 = sphi 0, %s99
    %s102 = sphi 0, %s101
    %s116 = sphi 0, %s102
    %s120 = sphi 0, %s120
    %s122 = sphi 0, %s120
    %s123 = sphi 0, %s122
    %s137 = sphi 0, %s123
    %s141 = sphi 0, %s141
    %s143 = sphi 0, %s141
    %s144 = sphi 0, %s143
    %s158 = sphi 0, %s144
    %s162 = sphi 0, %s162
    %s164 = sphi 0, %s162
    %s165 = sphi 0, %s164
    %s179 = sphi 0, %s165
    %s183 = sphi 0, %s183
    %s185 = sphi 0, %s183
    %s186 = sphi 0, %s185
    %s200 = sphi 0, %s186
    %s204 = sphi 0, %s204
    %s206 = sphi 0, %s204
    %s207 = sphi 0, %s206
    %s221 = sphi 0, %s207
    %s225 = sphi 0, %s225
    %s227 = sphi 0, %s225
    %s228 = sphi 0, %s227
    %s242 = sphi 0, %s228
    %s246 = sphi 0, %s246
    %s248 = sphi 0, %s246
    %s249 = sphi 0, %s248
    %s263 = sphi 0, %s249
    %s267 = sphi 0, %s267
    %s269 = sphi 0, %s267
    %s270 = sphi 0, %s269
    %s284 = sphi 0, %s270
    %s288 = sphi 0, %s288
    %s290 = sphi 0, %s288
    %s291 = sphi 0, %s290
    %s305 = sphi 0, %s291
    %s309 = sphi 0, %s309
    %s311 = sphi 0, %s309
    %s312 = sphi 0, %s311
    %s326 = sphi 0, %s312
    %s330 = sphi 0, %s330
    %s332 = sphi 0, %s330
    %s333 = sphi 0, %s332
    %s347 = sphi 0, %s333
    %s351 = sphi 0, %s351
    %s353 = sphi 0, %s351
    %s354 = sphi 0, %s353
    %s368 = sphi 0, %s354
    %s372 = sphi 0, %s372
    %s374 = sphi 0, %s372
    %s375 = sphi 0, %s374
    %s389 = sphi 0, %s375
    %s395 = sphi 0, %s397
    %s398 = sphi 0, %s395
    %s399 = sphi 0, %s398
    %s415 = sphi 0, %s399
  $region4: #{featformer_forward.1} parent=0 // loop_header_branch
    %26 = sbr.rel (%p24) target = $region8
  $region5: #{featformer_forward.1} parent=0 // loop_body
    %s28 = ssub.s32 %s23, 1
    %s29 = ssub.s32 %s23, 2
    %s30 = sadd.s32 %s23, 1
    %s31 = ssub.s32 %s23, %s30
    %p32 = scmp.eq.s32.totalorder %s31, 0
    %s34 = sadd.s32 %s33, 1
    %s35 = scalar_select %p32, %s33, %s34
    %p38 = pneg %p32
    %p39 = scmp.eq.s32.totalorder %s23, 1
    %p40 = por %p38, %p39
    %p41 = scmp.ne.s32.totalorder %s33, %s36
    %p42 = scmp.eq.s32.totalorder %s23, 0
    %p43 = por %p41, %p42
    %p44 = scmp.ne.s32.totalorder %s33, %s36
    %p45 = scmp.eq.s32.totalorder %s28, 1
    %p46 = por %p44, %p45
    %p47 = scmp.ne.s32.totalorder %s36, %s37
    %p48 = scmp.eq.s32.totalorder %s28, 0
    %p49 = por %p47, %p48
    %p50 = scmp.ne.s32.totalorder %s36, %s37
    %p51 = scmp.eq.s32.totalorder %s29, 1
    %p52 = por %p50, %p51
    %p54 = scmp.ne.s32.totalorder %s37, %s53
    %p55 = scmp.eq.s32.totalorder %s29, 0
    %p56 = por %p54, %p55
    %s58 = sadd.s32 %s57, 1
    %p61 = scmp.eq.s32.totalorder %s23, 1
    %p62 = scmp.ne.s32.totalorder %s57, %s59
    %p63 = scmp.eq.s32.totalorder %s23, 0
    %p64 = por %p62, %p63
    %p65 = scmp.ne.s32.totalorder %s57, %s59
    %p66 = scmp.eq.s32.totalorder %s28, 1
    %p67 = por %p65, %p66
    %p68 = scmp.ne.s32.totalorder %s59, %s60
    %p69 = scmp.eq.s32.totalorder %s28, 0
    %p70 = por %p68, %p69
    %p71 = scmp.ne.s32.totalorder %s59, %s60
    %p72 = scmp.eq.s32.totalorder %s29, 1
    %p73 = por %p71, %p72
    %p75 = scmp.ne.s32.totalorder %s60, %s74
    %p76 = scmp.eq.s32.totalorder %s29, 0
    %p77 = por %p75, %p76
    %s79 = sadd.s32 %s78, 1
    %p82 = scmp.eq.s32.totalorder %s23, 1
    %p83 = scmp.ne.s32.totalorder %s78, %s80
    %p84 = scmp.eq.s32.totalorder %s23, 0
    %p85 = por %p83, %p84
    %p86 = scmp.ne.s32.totalorder %s78, %s80
    %p87 = scmp.eq.s32.totalorder %s28, 1
    %p88 = por %p86, %p87
    %p89 = scmp.ne.s32.totalorder %s80, %s81
    %p90 = scmp.eq.s32.totalorder %s28, 0
    %p91 = por %p89, %p90
    %p92 = scmp.ne.s32.totalorder %s80, %s81
    %p93 = scmp.eq.s32.totalorder %s29, 1
    %p94 = por %p92, %p93
    %p96 = scmp.ne.s32.totalorder %s81, %s95
    %p97 = scmp.eq.s32.totalorder %s29, 0
    %p98 = por %p96, %p97
    %s100 = sadd.s32 %s99, 1
    %p103 = scmp.eq.s32.totalorder %s23, 1
    %p104 = scmp.ne.s32.totalorder %s99, %s101
    %p105 = scmp.eq.s32.totalorder %s23, 0
    %p106 = por %p104, %p105
    %p107 = scmp.ne.s32.totalorder %s99, %s101
    %p108 = scmp.eq.s32.totalorder %s28, 1
    %p109 = por %p107, %p108
    %p110 = scmp.ne.s32.totalorder %s101, %s102
    %p111 = scmp.eq.s32.totalorder %s28, 0
    %p112 = por %p110, %p111
    %p113 = scmp.ne.s32.totalorder %s101, %s102
    %p114 = scmp.eq.s32.totalorder %s29, 1
    %p115 = por %p113, %p114
    %p117 = scmp.ne.s32.totalorder %s102, %s116
    %p118 = scmp.eq.s32.totalorder %s29, 0
    %p119 = por %p117, %p118
    %s121 = sadd.s32 %s120, 1
    %p124 = scmp.eq.s32.totalorder %s23, 1
    %p125 = scmp.ne.s32.totalorder %s120, %s122
    %p126 = scmp.eq.s32.totalorder %s23, 0
    %p127 = por %p125, %p126
    %p128 = scmp.ne.s32.totalorder %s120, %s122
    %p129 = scmp.eq.s32.totalorder %s28, 1
    %p130 = por %p128, %p129
    %p131 = scmp.ne.s32.totalorder %s122, %s123
    %p132 = scmp.eq.s32.totalorder %s28, 0
    %p133 = por %p131, %p132
    %p134 = scmp.ne.s32.totalorder %s122, %s123
    %p135 = scmp.eq.s32.totalorder %s29, 1
    %p136 = por %p134, %p135
    %p138 = scmp.ne.s32.totalorder %s123, %s137
    %p139 = scmp.eq.s32.totalorder %s29, 0
    %p140 = por %p138, %p139
    %s142 = sadd.s32 %s141, 1
    %p145 = scmp.eq.s32.totalorder %s23, 1
    %p146 = scmp.ne.s32.totalorder %s141, %s143
    %p147 = scmp.eq.s32.totalorder %s23, 0
    %p148 = por %p146, %p147
    %p149 = scmp.ne.s32.totalorder %s141, %s143
    %p150 = scmp.eq.s32.totalorder %s28, 1
    %p151 = por %p149, %p150
    %p152 = scmp.ne.s32.totalorder %s143, %s144
    %p153 = scmp.eq.s32.totalorder %s28, 0
    %p154 = por %p152, %p153
    %p155 = scmp.ne.s32.totalorder %s143, %s144
    %p156 = scmp.eq.s32.totalorder %s29, 1
    %p157 = por %p155, %p156
    %p159 = scmp.ne.s32.totalorder %s144, %s158
    %p160 = scmp.eq.s32.totalorder %s29, 0
    %p161 = por %p159, %p160
    %s163 = sadd.s32 %s162, 1
    %p166 = scmp.eq.s32.totalorder %s23, 1
    %p167 = scmp.ne.s32.totalorder %s162, %s164
    %p168 = scmp.eq.s32.totalorder %s23, 0
    %p169 = por %p167, %p168
    %p170 = scmp.ne.s32.totalorder %s162, %s164
    %p171 = scmp.eq.s32.totalorder %s28, 1
    %p172 = por %p170, %p171
    %p173 = scmp.ne.s32.totalorder %s164, %s165
    %p174 = scmp.eq.s32.totalorder %s28, 0
    %p175 = por %p173, %p174
    %p176 = scmp.ne.s32.totalorder %s164, %s165
    %p177 = scmp.eq.s32.totalorder %s29, 1
    %p178 = por %p176, %p177
    %p180 = scmp.ne.s32.totalorder %s165, %s179
    %p181 = scmp.eq.s32.totalorder %s29, 0
    %p182 = por %p180, %p181
    %s184 = sadd.s32 %s183, 1
    %p187 = scmp.eq.s32.totalorder %s23, 1
    %p188 = scmp.ne.s32.totalorder %s183, %s185
    %p189 = scmp.eq.s32.totalorder %s23, 0
    %p190 = por %p188, %p189
    %p191 = scmp.ne.s32.totalorder %s183, %s185
    %p192 = scmp.eq.s32.totalorder %s28, 1
    %p193 = por %p191, %p192
    %p194 = scmp.ne.s32.totalorder %s185, %s186
    %p195 = scmp.eq.s32.totalorder %s28, 0
    %p196 = por %p194, %p195
    %p197 = scmp.ne.s32.totalorder %s185, %s186
    %p198 = scmp.eq.s32.totalorder %s29, 1
    %p199 = por %p197, %p198
    %p201 = scmp.ne.s32.totalorder %s186, %s200
    %p202 = scmp.eq.s32.totalorder %s29, 0
    %p203 = por %p201, %p202
    %s205 = sadd.s32 %s204, 1
    %p208 = scmp.eq.s32.totalorder %s23, 1
    %p209 = scmp.ne.s32.totalorder %s204, %s206
    %p210 = scmp.eq.s32.totalorder %s23, 0
    %p211 = por %p209, %p210
    %p212 = scmp.ne.s32.totalorder %s204, %s206
    %p213 = scmp.eq.s32.totalorder %s28, 1
    %p214 = por %p212, %p213
    %p215 = scmp.ne.s32.totalorder %s206, %s207
    %p216 = scmp.eq.s32.totalorder %s28, 0
    %p217 = por %p215, %p216
    %p218 = scmp.ne.s32.totalorder %s206, %s207
    %p219 = scmp.eq.s32.totalorder %s29, 1
    %p220 = por %p218, %p219
    %p222 = scmp.ne.s32.totalorder %s207, %s221
    %p223 = scmp.eq.s32.totalorder %s29, 0
    %p224 = por %p222, %p223
    %s226 = sadd.s32 %s225, 1
    %p229 = scmp.eq.s32.totalorder %s23, 1
    %p230 = scmp.ne.s32.totalorder %s225, %s227
    %p231 = scmp.eq.s32.totalorder %s23, 0
    %p232 = por %p230, %p231
    %p233 = scmp.ne.s32.totalorder %s225, %s227
    %p234 = scmp.eq.s32.totalorder %s28, 1
    %p235 = por %p233, %p234
    %p236 = scmp.ne.s32.totalorder %s227, %s228
    %p237 = scmp.eq.s32.totalorder %s28, 0
    %p238 = por %p236, %p237
    %p239 = scmp.ne.s32.totalorder %s227, %s228
    %p240 = scmp.eq.s32.totalorder %s29, 1
    %p241 = por %p239, %p240
    %p243 = scmp.ne.s32.totalorder %s228, %s242
    %p244 = scmp.eq.s32.totalorder %s29, 0
    %p245 = por %p243, %p244
    %s247 = sadd.s32 %s246, 1
    %p250 = scmp.eq.s32.totalorder %s23, 1
    %p251 = scmp.ne.s32.totalorder %s246, %s248
    %p252 = scmp.eq.s32.totalorder %s23, 0
    %p253 = por %p251, %p252
    %p254 = scmp.ne.s32.totalorder %s246, %s248
    %p255 = scmp.eq.s32.totalorder %s28, 1
    %p256 = por %p254, %p255
    %p257 = scmp.ne.s32.totalorder %s248, %s249
    %p258 = scmp.eq.s32.totalorder %s28, 0
    %p259 = por %p257, %p258
    %p260 = scmp.ne.s32.totalorder %s248, %s249
    %p261 = scmp.eq.s32.totalorder %s29, 1
    %p262 = por %p260, %p261
    %p264 = scmp.ne.s32.totalorder %s249, %s263
    %p265 = scmp.eq.s32.totalorder %s29, 0
    %p266 = por %p264, %p265
    %s268 = sadd.s32 %s267, 1
    %p271 = scmp.eq.s32.totalorder %s23, 1
    %p272 = scmp.ne.s32.totalorder %s267, %s269
    %p273 = scmp.eq.s32.totalorder %s23, 0
    %p274 = por %p272, %p273
    %p275 = scmp.ne.s32.totalorder %s267, %s269
    %p276 = scmp.eq.s32.totalorder %s28, 1
    %p277 = por %p275, %p276
    %p278 = scmp.ne.s32.totalorder %s269, %s270
    %p279 = scmp.eq.s32.totalorder %s28, 0
    %p280 = por %p278, %p279
    %p281 = scmp.ne.s32.totalorder %s269, %s270
    %p282 = scmp.eq.s32.totalorder %s29, 1
    %p283 = por %p281, %p282
    %p285 = scmp.ne.s32.totalorder %s270, %s284
    %p286 = scmp.eq.s32.totalorder %s29, 0
    %p287 = por %p285, %p286
    %s289 = sadd.s32 %s288, 1
    %p292 = scmp.eq.s32.totalorder %s23, 1
    %p293 = scmp.ne.s32.totalorder %s288, %s290
    %p294 = scmp.eq.s32.totalorder %s23, 0
    %p295 = por %p293, %p294
    %p296 = scmp.ne.s32.totalorder %s288, %s290
    %p297 = scmp.eq.s32.totalorder %s28, 1
    %p298 = por %p296, %p297
    %p299 = scmp.ne.s32.totalorder %s290, %s291
    %p300 = scmp.eq.s32.totalorder %s28, 0
    %p301 = por %p299, %p300
    %p302 = scmp.ne.s32.totalorder %s290, %s291
    %p303 = scmp.eq.s32.totalorder %s29, 1
    %p304 = por %p302, %p303
    %p306 = scmp.ne.s32.totalorder %s291, %s305
    %p307 = scmp.eq.s32.totalorder %s29, 0
    %p308 = por %p306, %p307
    %s310 = sadd.s32 %s309, 1
    %p313 = scmp.eq.s32.totalorder %s23, 1
    %p314 = scmp.ne.s32.totalorder %s309, %s311
    %p315 = scmp.eq.s32.totalorder %s23, 0
    %p316 = por %p314, %p315
    %p317 = scmp.ne.s32.totalorder %s309, %s311
    %p318 = scmp.eq.s32.totalorder %s28, 1
    %p319 = por %p317, %p318
    %p320 = scmp.ne.s32.totalorder %s311, %s312
    %p321 = scmp.eq.s32.totalorder %s28, 0
    %p322 = por %p320, %p321
    %p323 = scmp.ne.s32.totalorder %s311, %s312
    %p324 = scmp.eq.s32.totalorder %s29, 1
    %p325 = por %p323, %p324
    %p327 = scmp.ne.s32.totalorder %s312, %s326
    %p328 = scmp.eq.s32.totalorder %s29, 0
    %p329 = por %p327, %p328
    %s331 = sadd.s32 %s330, 1
    %p334 = scmp.eq.s32.totalorder %s23, 1
    %p335 = scmp.ne.s32.totalorder %s330, %s332
    %p336 = scmp.eq.s32.totalorder %s23, 0
    %p337 = por %p335, %p336
    %p338 = scmp.ne.s32.totalorder %s330, %s332
    %p339 = scmp.eq.s32.totalorder %s28, 1
    %p340 = por %p338, %p339
    %p341 = scmp.ne.s32.totalorder %s332, %s333
    %p342 = scmp.eq.s32.totalorder %s28, 0
    %p343 = por %p341, %p342
    %p344 = scmp.ne.s32.totalorder %s332, %s333
    %p345 = scmp.eq.s32.totalorder %s29, 1
    %p346 = por %p344, %p345
    %p348 = scmp.ne.s32.totalorder %s333, %s347
    %p349 = scmp.eq.s32.totalorder %s29, 0
    %p350 = por %p348, %p349
    %s352 = sadd.s32 %s351, 1
    %p355 = scmp.eq.s32.totalorder %s23, 1
    %p356 = scmp.ne.s32.totalorder %s351, %s353
    %p357 = scmp.eq.s32.totalorder %s23, 0
    %p358 = por %p356, %p357
    %p359 = scmp.ne.s32.totalorder %s351, %s353
    %p360 = scmp.eq.s32.totalorder %s28, 1
    %p361 = por %p359, %p360
    %p362 = scmp.ne.s32.totalorder %s353, %s354
    %p363 = scmp.eq.s32.totalorder %s28, 0
    %p364 = por %p362, %p363
    %p365 = scmp.ne.s32.totalorder %s353, %s354
    %p366 = scmp.eq.s32.totalorder %s29, 1
    %p367 = por %p365, %p366
    %p369 = scmp.ne.s32.totalorder %s354, %s368
    %p370 = scmp.eq.s32.totalorder %s29, 0
    %p371 = por %p369, %p370
    %s373 = sadd.s32 %s372, 1
    %p376 = scmp.eq.s32.totalorder %s23, 1
    %p377 = scmp.ne.s32.totalorder %s372, %s374
    %p378 = scmp.eq.s32.totalorder %s23, 0
    %p379 = por %p377, %p378
    %p380 = scmp.ne.s32.totalorder %s372, %s374
    %p381 = scmp.eq.s32.totalorder %s28, 1
    %p382 = por %p380, %p381
    %p383 = scmp.ne.s32.totalorder %s374, %s375
    %p384 = scmp.eq.s32.totalorder %s28, 0
    %p385 = por %p383, %p384
    %p386 = scmp.ne.s32.totalorder %s374, %s375
    %p387 = scmp.eq.s32.totalorder %s29, 1
    %p388 = por %p386, %p387
    %p390 = scmp.ne.s32.totalorder %s375, %s389
    %p391 = scmp.eq.s32.totalorder %s29, 0
    %p392 = por %p390, %p391
    %s393 = ssub.s32 %s23, %s30
    %p394 = scmp.eq.s32.totalorder %s393, 0
    %s396 = sadd.s32 %s395, 1
    %s397 = scalar_select %p394, %s395, %s396
    %p400 = pneg %p394
    %p401 = scmp.eq.s32.totalorder %s23, 1
    %p402 = por %p400, %p401
    %p403 = scmp.ne.s32.totalorder %s395, %s398
    %p404 = scmp.eq.s32.totalorder %s23, 0
    %p405 = por %p403, %p404
    %p406 = scmp.ne.s32.totalorder %s395, %s398
    %p407 = scmp.eq.s32.totalorder %s28, 1
    %p408 = por %p406, %p407
    %p409 = scmp.ne.s32.totalorder %s398, %s399
    %p410 = scmp.eq.s32.totalorder %s28, 0
    %p411 = por %p409, %p410
    %p412 = scmp.ne.s32.totalorder %s398, %s399
    %p413 = scmp.eq.s32.totalorder %s29, 1
    %p414 = por %p412, %p413
    %p416 = scmp.ne.s32.totalorder %s399, %s415
    %p417 = scmp.eq.s32.totalorder %s29, 0
    %p418 = por %p416, %p417
    %p419 = scmp.le.s32.totalorder 1, %s23
    %p420 = scmp.lt.s32.totalorder %s23, 3
    %p421 = pnand %p419, %p420
    %p422 = pneg %p421
    // Predicated region
    $region9: #{featformer_forward.1} parent=5 // pred_check
      _
    $region10: #{featformer_forward.1} parent=5 // pred_check_branch
      %424 = sbr.rel (%p421) target = $region12
    $region11: #{featformer_forward.1} parent=5 // pred_region
      %s425 = ssub.s32 %s23, 1
      // Predicated region
      $region13: #{featformer_forward.1} parent=11 // pred_check
        %p426 = pneg %p70
      $region14: #{featformer_forward.1} parent=11 // pred_check_branch
        %428 = sbr.rel (%p426) target = $region16
      $region15: #{featformer_forward.1} parent=11 // pred_region
        _
      $region16: #{featformer_forward.1} parent=11 // pred_fallthru
        _
      // Predicated region
      $region17: #{featformer_forward.1} parent=11 // pred_check
        %p429 = pneg %p91
      $region18: #{featformer_forward.1} parent=11 // pred_check_branch
        %431 = sbr.rel (%p429) target = $region20
      $region19: #{featformer_forward.1} parent=11 // pred_region
        _
      $region20: #{featformer_forward.1} parent=11 // pred_fallthru
        _
      // Predicated region
      $region21: #{featformer_forward.1} parent=11 // pred_check
        %p432 = pneg %p112
      $region22: #{featformer_forward.1} parent=11 // pred_check_branch
        %434 = sbr.rel (%p432) target = $region24
      $region23: #{featformer_forward.1} parent=11 // pred_region
        _
      $region24: #{featformer_forward.1} parent=11 // pred_fallthru
        _
      // Predicated region
      $region25: #{featformer_forward.1} parent=11 // pred_check
        %p435 = pneg %p133
      $region26: #{featformer_forward.1} parent=11 // pred_check_branch
        %437 = sbr.rel (%p435) target = $region28
      $region27: #{featformer_forward.1} parent=11 // pred_region
        _
      $region28: #{featformer_forward.1} parent=11 // pred_fallthru
        _
      // Predicated region
      $region29: #{featformer_forward.1} parent=11 // pred_check
        %p438 = pneg %p154
      $region30: #{featformer_forward.1} parent=11 // pred_check_branch
        %440 = sbr.rel (%p438) target = $region32
      $region31: #{featformer_forward.1} parent=11 // pred_region
        _
      $region32: #{featformer_forward.1} parent=11 // pred_fallthru
        _
      // Predicated region
      $region33: #{featformer_forward.1} parent=11 // pred_check
        %p441 = pneg %p175
      $region34: #{featformer_forward.1} parent=11 // pred_check_branch
        %443 = sbr.rel (%p441) target = $region36
      $region35: #{featformer_forward.1} parent=11 // pred_region
        _
      $region36: #{featformer_forward.1} parent=11 // pred_fallthru
        _
      // Predicated region
      $region37: #{featformer_forward.1} parent=11 // pred_check
        %p444 = pneg %p196
      $region38: #{featformer_forward.1} parent=11 // pred_check_branch
        %446 = sbr.rel (%p444) target = $region40
      $region39: #{featformer_forward.1} parent=11 // pred_region
        _
      $region40: #{featformer_forward.1} parent=11 // pred_fallthru
        _
      // Predicated region
      $region41: #{featformer_forward.1} parent=11 // pred_check
        %p447 = pneg %p217
      $region42: #{featformer_forward.1} parent=11 // pred_check_branch
        %449 = sbr.rel (%p447) target = $region44
      $region43: #{featformer_forward.1} parent=11 // pred_region
        _
      $region44: #{featformer_forward.1} parent=11 // pred_fallthru
        _
      // Predicated region
      $region45: #{featformer_forward.1} parent=11 // pred_check
        %p450 = pneg %p238
      $region46: #{featformer_forward.1} parent=11 // pred_check_branch
        %452 = sbr.rel (%p450) target = $region48
      $region47: #{featformer_forward.1} parent=11 // pred_region
        _
      $region48: #{featformer_forward.1} parent=11 // pred_fallthru
        _
      // Predicated region
      $region49: #{featformer_forward.1} parent=11 // pred_check
        %p453 = pneg %p259
      $region50: #{featformer_forward.1} parent=11 // pred_check_branch
        %455 = sbr.rel (%p453) target = $region52
      $region51: #{featformer_forward.1} parent=11 // pred_region
        _
      $region52: #{featformer_forward.1} parent=11 // pred_fallthru
        _
      // Predicated region
      $region53: #{featformer_forward.1} parent=11 // pred_check
        %p456 = pneg %p280
      $region54: #{featformer_forward.1} parent=11 // pred_check_branch
        %458 = sbr.rel (%p456) target = $region56
      $region55: #{featformer_forward.1} parent=11 // pred_region
        _
      $region56: #{featformer_forward.1} parent=11 // pred_fallthru
        _
      // Predicated region
      $region57: #{featformer_forward.1} parent=11 // pred_check
        %p459 = pneg %p301
      $region58: #{featformer_forward.1} parent=11 // pred_check_branch
        %461 = sbr.rel (%p459) target = $region60
      $region59: #{featformer_forward.1} parent=11 // pred_region
        _
      $region60: #{featformer_forward.1} parent=11 // pred_fallthru
        _
      // Predicated region
      $region61: #{featformer_forward.1} parent=11 // pred_check
        %p462 = pneg %p322
      $region62: #{featformer_forward.1} parent=11 // pred_check_branch
        %464 = sbr.rel (%p462) target = $region64
      $region63: #{featformer_forward.1} parent=11 // pred_region
        _
      $region64: #{featformer_forward.1} parent=11 // pred_fallthru
        _
      // Predicated region
      $region65: #{featformer_forward.1} parent=11 // pred_check
        %p465 = pneg %p343
      $region66: #{featformer_forward.1} parent=11 // pred_check_branch
        %467 = sbr.rel (%p465) target = $region68
      $region67: #{featformer_forward.1} parent=11 // pred_region
        _
      $region68: #{featformer_forward.1} parent=11 // pred_fallthru
        _
      // Predicated region
      $region69: #{featformer_forward.1} parent=11 // pred_check
        %p468 = pneg %p364
      $region70: #{featformer_forward.1} parent=11 // pred_check_branch
        %470 = sbr.rel (%p468) target = $region72
      $region71: #{featformer_forward.1} parent=11 // pred_region
        _
      $region72: #{featformer_forward.1} parent=11 // pred_fallthru
        _
      // Predicated region
      $region73: #{featformer_forward.1} parent=11 // pred_check
        %p471 = pneg %p385
      $region74: #{featformer_forward.1} parent=11 // pred_check_branch
        %473 = sbr.rel (%p471) target = $region76
      $region75: #{featformer_forward.1} parent=11 // pred_region
        _
      $region76: #{featformer_forward.1} parent=11 // pred_fallthru
        _
    $region12: #{featformer_forward.1} parent=5 // pred_fallthru
      _
    %p474 = scmp.lt.s32.totalorder %s23, 2
    // Predicated region
    $region77: #{featformer_forward.1} parent=5 // pred_check
      %p475 = pneg %p474
    $region78: #{featformer_forward.1} parent=5 // pred_check_branch
      %477 = sbr.rel (%p475) target = $region80
    $region79: #{featformer_forward.1} parent=5 // pred_region
      // Predicated region
      $region81: #{featformer_forward.1} parent=79 // pred_check
        %p478 = pneg %p43
      $region82: #{featformer_forward.1} parent=79 // pred_check_branch
        %480 = sbr.rel (%p478) target = $region84
      $region83: #{featformer_forward.1} parent=79 // pred_region
        %p481 = scmp.lt.s32.totalorder %s23, 1
        %s482 = scalar_select %p481, %s23, 1
        %s483 = smul.addr %s482, 12
        %s484 = smul.addr %s483, 4
        %s485 = scalar_lea.vmem %s0, %s484
      $region84: #{featformer_forward.1} parent=79 // pred_fallthru
        _
    $region80: #{featformer_forward.1} parent=5 // pred_fallthru
      _
    %p486 = scmp.le.s32.totalorder 1, %s23
    %p487 = scmp.lt.s32.totalorder %s23, 3
    %p488 = pnand %p486, %p487
    %p489 = pneg %p488
    // Predicated region
    $region85: #{featformer_forward.1} parent=5 // pred_check
      _
    $region86: #{featformer_forward.1} parent=5 // pred_check_branch
      %491 = sbr.rel (%p488) target = $region88
    $region87: #{featformer_forward.1} parent=5 // pred_region
      %s492 = ssub.s32 %s23, 1
      %p493 = scmp.lt.s32.totalorder %s28, 1
      %s494 = scalar_select %p493, %s28, 1
      %s495 = smul.addr %s494, 12
      %s496 = smul.addr %s495, 4
      %s497 = scalar_lea.vmem %s0, %s496
      %p498 = pneg %p49
      %p499 = pneg %p46
      %p500 = pneg %p70
      %p501 = pneg %p67
      %p502 = pneg %p91
      %p503 = pneg %p88
      %p504 = pneg %p112
      %p505 = pneg %p109
      %p506 = pneg %p133
      %p507 = pneg %p130
      %p508 = pneg %p154
      %p509 = pneg %p151
      %p510 = pneg %p175
      %p511 = pneg %p172
      %p512 = pneg %p196
      %p513 = pneg %p193
      %p514 = pneg %p217
      %p515 = pneg %p214
      %p516 = pneg %p238
      %p517 = pneg %p235
      %p518 = pneg %p259
      %p519 = pneg %p256
      %p520 = pneg %p280
      %p521 = pneg %p277
      %p522 = pneg %p301
      %p523 = pneg %p298
      %p524 = pneg %p322
      %p525 = pneg %p319
      %p526 = pneg %p343
      %p527 = pneg %p340
      %p528 = pneg %p364
      %p529 = pneg %p361
      %p530 = pneg %p385
      %p531 = pneg %p382
      %p532 = pneg %p411
      %p533 = pneg %p408
      %p534 = scmp.lt.s32.totalorder %s28, 1
      %s535 = scalar_select %p534, %s28, 1
      %s536 = smul.addr %s535, 8
      %s537 = scalar_lea.vmem %s17, %s536
      %p538 = scmp.lt.s32.totalorder %s28, 1
      %s539 = scalar_select %p538, %s28, 1
      %s540 = smul.addr %s539, 12
      %s541 = smul.addr %s540, 4
      %s542 = scalar_lea.vmem %s0, %s541
      %p543 = scmp.lt.s32.totalorder %s28, 1
      %s544 = scalar_select %p543, %s28, 1
      %s545 = smul.addr %s544, 8
      %s546 = scalar_lea.vmem %s17, %s545
      %v548 = vld [vmem:[%s542] sm:$0xff]
      %v549 = vld [vmem:[%s542 + $0x8] sm:$0xff]
      %v550 = vld [vmem:[%s542 + $0x10] sm:$0xff]
      %v551 = vld [vmem:[%s542 + $0x18] sm:$0xff]
      %v552 = vld [vmem:[%s542 + $0x20] sm:$0xff]
      %v553 = vld [vmem:[%s542 + $0x28] sm:$0xff]
      %v554 = vld [vmem:[%s1] sm:$0xf]
      %v555 = vld [vmem:[%s1 + $0x4] sm:$0xf]
      %v556 = vld [vmem:[%s1 + $0x8] sm:$0xf]
      %v557 = vld [vmem:[%s1 + $0xc] sm:$0xf]
      %v558 = vld [vmem:[%s1 + $0x10] sm:$0xf]
      %v559 = vld [vmem:[%s1 + $0x14] sm:$0xf]
      %v560 = vld [vmem:[%s1 + $0x18] sm:$0xf]
      %v561 = vld [vmem:[%s1 + $0x1c] sm:$0xf]
      %v562 = vld [vmem:[%s1 + $0x20] sm:$0xf]
      %v563 = vld [vmem:[%s1 + $0x24] sm:$0xf]
      %v564 = vld [vmem:[%s1 + $0x28] sm:$0xf]
      %v565 = vld [vmem:[%s1 + $0x2c] sm:$0xf]
      %v566 = vld [vmem:[%s1 + $0x30] sm:$0xf]
      %v567 = vld [vmem:[%s1 + $0x34] sm:$0xf]
      %v568 = vld [vmem:[%s1 + $0x38] sm:$0xf]
      %v569 = vld [vmem:[%s1 + $0x3c] sm:$0xf]
      %v570 = vld [vmem:[%s1 + $0x40] sm:$0xf]
      %v571 = vld [vmem:[%s1 + $0x44] sm:$0xf]
      %v572 = vld [vmem:[%s1 + $0x48] sm:$0xf]
      %v573 = vld [vmem:[%s1 + $0x4c] sm:$0xf]
      %v574 = vld [vmem:[%s1 + $0x50] sm:$0xf]
      %v575 = vld [vmem:[%s1 + $0x54] sm:$0xf]
      %v576 = vld [vmem:[%s1 + $0x58] sm:$0xf]
      %v577 = vld [vmem:[%s1 + $0x5c] sm:$0xf]
      %v578 = vld [vmem:[%s1 + $0x60] sm:$0xf]
      %v579 = vld [vmem:[%s1 + $0x64] sm:$0xf]
      %v580 = vld [vmem:[%s1 + $0x68] sm:$0xf]
      %v581 = vld [vmem:[%s1 + $0x6c] sm:$0xf]
      %v582 = vld [vmem:[%s1 + $0x70] sm:$0xf]
      %v583 = vld [vmem:[%s1 + $0x74] sm:$0xf]
      %v584 = vld [vmem:[%s1 + $0x78] sm:$0xf]
      %v585 = vld [vmem:[%s1 + $0x7c] sm:$0xf]
      %v586 = vld [vmem:[%s1 + $0x80] sm:$0xf]
      %v587 = vld [vmem:[%s1 + $0x84] sm:$0xf]
      %v588 = vld [vmem:[%s1 + $0x88] sm:$0xf]
      %v589 = vld [vmem:[%s1 + $0x8c] sm:$0xf]
      %v590 = vld [vmem:[%s1 + $0x90] sm:$0xf]
      %v591 = vld [vmem:[%s1 + $0x94] sm:$0xf]
      %v592 = vld [vmem:[%s1 + $0x98] sm:$0xf]
      %v593 = vld [vmem:[%s1 + $0x9c] sm:$0xf]
      %v594 = vld [vmem:[%s1 + $0xa0] sm:$0xf]
      %v595 = vld [vmem:[%s1 + $0xa4] sm:$0xf]
      %v596 = vld [vmem:[%s1 + $0xa8] sm:$0xf]
      %v597 = vld [vmem:[%s1 + $0xac] sm:$0xf]
      %v598 = vld [vmem:[%s1 + $0xb0] sm:$0xf]
      %v599 = vld [vmem:[%s1 + $0xb4] sm:$0xf]
      %v600 = vld [vmem:[%s1 + $0xb8] sm:$0xf]
      %v601 = vld [vmem:[%s1 + $0xbc] sm:$0xf]
      %v602 = vld [vmem:[%s1 + $0xc0] sm:$0xf]
      %v603 = vld [vmem:[%s1 + $0xc4] sm:$0xf]
      %v604 = vld [vmem:[%s1 + $0xc8] sm:$0xf]
      %v605 = vld [vmem:[%s1 + $0xcc] sm:$0xf]
      %v606 = vld [vmem:[%s1 + $0xd0] sm:$0xf]
      %v607 = vld [vmem:[%s1 + $0xd4] sm:$0xf]
      %v608 = vld [vmem:[%s1 + $0xd8] sm:$0xf]
      %v609 = vld [vmem:[%s1 + $0xdc] sm:$0xf]
      %v610 = vld [vmem:[%s1 + $0xe0] sm:$0xf]
      %v611 = vld [vmem:[%s1 + $0xe4] sm:$0xf]
      %v612 = vld [vmem:[%s1 + $0xe8] sm:$0xf]
      %v613 = vld [vmem:[%s1 + $0xec] sm:$0xf]
      %v614 = vld [vmem:[%s1 + $0xf0] sm:$0xf]
      %v615 = vld [vmem:[%s1 + $0xf4] sm:$0xf]
      %v616 = vld [vmem:[%s1 + $0xf8] sm:$0xf]
      %v617 = vld [vmem:[%s1 + $0xfc] sm:$0xf]
      %v618 = vld [vmem:[%s1 + $0x100] sm:$0xf]
      %v619 = vld [vmem:[%s1 + $0x104] sm:$0xf]
      %v620 = vld [vmem:[%s1 + $0x108] sm:$0xf]
      %v621 = vld [vmem:[%s1 + $0x10c] sm:$0xf]
      %v622 = vld [vmem:[%s1 + $0x110] sm:$0xf]
      %v623 = vld [vmem:[%s1 + $0x114] sm:$0xf]
      %v624 = vld [vmem:[%s1 + $0x118] sm:$0xf]
      %v625 = vld [vmem:[%s1 + $0x11c] sm:$0xf]
      %v626 = vld [vmem:[%s1 + $0x120] sm:$0xf]
      %v627 = vld [vmem:[%s1 + $0x124] sm:$0xf]
      %v628 = vld [vmem:[%s1 + $0x128] sm:$0xf]
      %v629 = vld [vmem:[%s1 + $0x12c] sm:$0xf]
      %v630 = vld [vmem:[%s1 + $0x130] sm:$0xf]
      %v631 = vld [vmem:[%s1 + $0x134] sm:$0xf]
      %v632 = vld [vmem:[%s1 + $0x138] sm:$0xf]
      %v633 = vld [vmem:[%s1 + $0x13c] sm:$0xf]
      %v634 = vld [vmem:[%s1 + $0x140] sm:$0xf]
      %v635 = vld [vmem:[%s1 + $0x144] sm:$0xf]
      %v636 = vld [vmem:[%s1 + $0x148] sm:$0xf]
      %v637 = vld [vmem:[%s1 + $0x14c] sm:$0xf]
      %v638 = vld [vmem:[%s1 + $0x150] sm:$0xf]
      %v639 = vld [vmem:[%s1 + $0x154] sm:$0xf]
      %v640 = vld [vmem:[%s1 + $0x158] sm:$0xf]
      %v641 = vld [vmem:[%s1 + $0x15c] sm:$0xf]
      %v642 = vld [vmem:[%s1 + $0x160] sm:$0xf]
      %v643 = vld [vmem:[%s1 + $0x164] sm:$0xf]
      %v644 = vld [vmem:[%s1 + $0x168] sm:$0xf]
      %v645 = vld [vmem:[%s1 + $0x16c] sm:$0xf]
      %v646 = vld [vmem:[%s1 + $0x170] sm:$0xf]
      %v647 = vld [vmem:[%s1 + $0x174] sm:$0xf]
      %v648 = vld [vmem:[%s1 + $0x178] sm:$0xf]
      %v649 = vld [vmem:[%s1 + $0x17c] sm:$0xf]
      %v650 = vld [vmem:[%s2] sm:$0x1]
      %v652 = vlaneseq
      %v653 = vshrl.u32 %v652, 7
      %v654 = vsub.s32 0, %v653
      %v655 = vrot.slane %v650, %v654
      %v663 = vunpack.c.l.b16 %v548
      %v664 = vunpack.c.h.b16 %v548
      %v665 = vunpack.c.l.b16 %v549
      %v666 = vunpack.c.h.b16 %v549
      %v667 = vunpack.c.l.b16 %v550
      %v668 = vunpack.c.h.b16 %v550
      %v669 = vunpack.c.l.b16 %v551
      %v670 = vunpack.c.h.b16 %v551
      %v671 = vunpack.c.l.b16 %v552
      %v672 = vunpack.c.h.b16 %v552
      %v673 = vunpack.c.l.b16 %v553
      %v674 = vunpack.c.h.b16 %v553
      %v675 = vpack.c.b16 %v669, %v663
      %v676 = vpack.c.b16 %v670, %v664
      %v677 = vpack.c.b16 %v671, %v665
      %v678 = vpack.c.b16 %v672, %v666
      %v679 = vpack.c.b16 %v673, %v667
      %v680 = vpack.c.b16 %v674, %v668
      %v783 = vunpack.c.l.b16 %v554
      %v784 = vunpack.c.l.b16 %v555
      %v785 = vunpack.c.l.b16 %v556
      %v786 = vunpack.c.l.b16 %v557
      %v787 = vunpack.c.l.b16 %v558
      %v788 = vunpack.c.l.b16 %v559
      %v789 = vunpack.c.l.b16 %v560
      %v790 = vunpack.c.l.b16 %v561
      %v791 = vunpack.c.l.b16 %v562
      %v792 = vunpack.c.l.b16 %v563
      %v793 = vunpack.c.l.b16 %v564
      %v794 = vunpack.c.l.b16 %v565
      %v795 = vunpack.c.l.b16 %v566
      %v796 = vunpack.c.l.b16 %v567
      %v797 = vunpack.c.l.b16 %v568
      %v798 = vunpack.c.l.b16 %v569
      %v799 = vunpack.c.l.b16 %v570
      %v800 = vunpack.c.l.b16 %v571
      %v801 = vunpack.c.l.b16 %v572
      %v802 = vunpack.c.l.b16 %v573
      %v803 = vunpack.c.l.b16 %v574
      %v804 = vunpack.c.l.b16 %v575
      %v805 = vunpack.c.l.b16 %v576
      %v806 = vunpack.c.l.b16 %v577
      %v807 = vunpack.c.l.b16 %v578
      %v808 = vunpack.c.l.b16 %v579
      %v809 = vunpack.c.l.b16 %v580
      %v810 = vunpack.c.l.b16 %v581
      %v811 = vunpack.c.l.b16 %v582
      %v812 = vunpack.c.l.b16 %v583
      %v813 = vunpack.c.l.b16 %v584
      %v814 = vunpack.c.l.b16 %v585
      %v815 = vunpack.c.l.b16 %v586
      %v816 = vunpack.c.l.b16 %v587
      %v817 = vunpack.c.l.b16 %v588
      %v818 = vunpack.c.l.b16 %v589
      %v819 = vunpack.c.l.b16 %v590
      %v820 = vunpack.c.l.b16 %v591
      %v821 = vunpack.c.l.b16 %v592
      %v822 = vunpack.c.l.b16 %v593
      %v823 = vunpack.c.l.b16 %v594
      %v824 = vunpack.c.l.b16 %v595
      %v825 = vunpack.c.l.b16 %v596
      %v826 = vunpack.c.l.b16 %v597
      %v827 = vunpack.c.l.b16 %v598
      %v828 = vunpack.c.l.b16 %v599
      %v829 = vunpack.c.l.b16 %v600
      %v830 = vunpack.c.l.b16 %v601
      %v831 = vunpack.c.l.b16 %v602
      %v832 = vunpack.c.l.b16 %v603
      %v833 = vunpack.c.l.b16 %v604
      %v834 = vunpack.c.l.b16 %v605
      %v835 = vunpack.c.l.b16 %v606
      %v836 = vunpack.c.l.b16 %v607
      %v837 = vunpack.c.l.b16 %v608
      %v838 = vunpack.c.l.b16 %v609
      %v839 = vunpack.c.l.b16 %v610
      %v840 = vunpack.c.l.b16 %v611
      %v841 = vunpack.c.l.b16 %v612
      %v842 = vunpack.c.l.b16 %v613
      %v843 = vunpack.c.l.b16 %v614
      %v844 = vunpack.c.l.b16 %v615
      %v845 = vunpack.c.l.b16 %v616
      %v846 = vunpack.c.l.b16 %v617
      %v847 = vunpack.c.l.b16 %v618
      %v848 = vunpack.c.l.b16 %v619
      %v849 = vunpack.c.l.b16 %v620
      %v850 = vunpack.c.l.b16 %v621
      %v851 = vunpack.c.l.b16 %v622
      %v852 = vunpack.c.l.b16 %v623
      %v853 = vunpack.c.l.b16 %v624
      %v854 = vunpack.c.l.b16 %v625
      %v855 = vunpack.c.l.b16 %v626
      %v856 = vunpack.c.l.b16 %v627
      %v857 = vunpack.c.l.b16 %v628
      %v858 = vunpack.c.l.b16 %v629
      %v859 = vunpack.c.l.b16 %v630
      %v860 = vunpack.c.l.b16 %v631
      %v861 = vunpack.c.l.b16 %v632
      %v862 = vunpack.c.l.b16 %v633
      %v863 = vunpack.c.l.b16 %v634
      %v864 = vunpack.c.l.b16 %v635
      %v865 = vunpack.c.l.b16 %v636
      %v866 = vunpack.c.l.b16 %v637
      %v867 = vunpack.c.l.b16 %v638
      %v868 = vunpack.c.l.b16 %v639
      %v869 = vunpack.c.l.b16 %v640
      %v870 = vunpack.c.l.b16 %v641
      %v871 = vunpack.c.l.b16 %v642
      %v872 = vunpack.c.l.b16 %v643
      %v873 = vunpack.c.l.b16 %v644
      %v874 = vunpack.c.l.b16 %v645
      %v875 = vunpack.c.l.b16 %v646
      %v876 = vunpack.c.l.b16 %v647
      %v877 = vunpack.c.l.b16 %v648
      %v878 = vunpack.c.l.b16 %v649
      %v879 = vpack.c.b16 %v784, %v783
      %v880 = vpack.c.b16 %v786, %v785
      %v881 = vpack.c.b16 %v788, %v787
      %v882 = vpack.c.b16 %v790, %v789
      %v883 = vpack.c.b16 %v792, %v791
      %v884 = vpack.c.b16 %v794, %v793
      %v885 = vpack.c.b16 %v796, %v795
      %v886 = vpack.c.b16 %v798, %v797
      %v887 = vpack.c.b16 %v800, %v799
      %v888 = vpack.c.b16 %v802, %v801
      %v889 = vpack.c.b16 %v804, %v803
      %v890 = vpack.c.b16 %v806, %v805
      %v891 = vpack.c.b16 %v808, %v807
      %v892 = vpack.c.b16 %v810, %v809
      %v893 = vpack.c.b16 %v812, %v811
      %v894 = vpack.c.b16 %v814, %v813
      %v895 = vpack.c.b16 %v816, %v815
      %v896 = vpack.c.b16 %v818, %v817
      %v897 = vpack.c.b16 %v820, %v819
      %v898 = vpack.c.b16 %v822, %v821
      %v899 = vpack.c.b16 %v824, %v823
      %v900 = vpack.c.b16 %v826, %v825
      %v901 = vpack.c.b16 %v828, %v827
      %v902 = vpack.c.b16 %v830, %v829
      %v903 = vpack.c.b16 %v832, %v831
      %v904 = vpack.c.b16 %v834, %v833
      %v905 = vpack.c.b16 %v836, %v835
      %v906 = vpack.c.b16 %v838, %v837
      %v907 = vpack.c.b16 %v840, %v839
      %v908 = vpack.c.b16 %v842, %v841
      %v909 = vpack.c.b16 %v844, %v843
      %v910 = vpack.c.b16 %v846, %v845
      %v911 = vpack.c.b16 %v848, %v847
      %v912 = vpack.c.b16 %v850, %v849
      %v913 = vpack.c.b16 %v852, %v851
      %v914 = vpack.c.b16 %v854, %v853
      %v915 = vpack.c.b16 %v856, %v855
      %v916 = vpack.c.b16 %v858, %v857
      %v917 = vpack.c.b16 %v860, %v859
      %v918 = vpack.c.b16 %v862, %v861
      %v919 = vpack.c.b16 %v864, %v863
      %v920 = vpack.c.b16 %v866, %v865
      %v921 = vpack.c.b16 %v868, %v867
      %v922 = vpack.c.b16 %v870, %v869
      %v923 = vpack.c.b16 %v872, %v871
      %v924 = vpack.c.b16 %v874, %v873
      %v925 = vpack.c.b16 %v876, %v875
      %v926 = vpack.c.b16 %v878, %v877
      %975 = vmatprep.subr.bf16.mxu0 0
      %976 = vmatpush1.bf16.msra.mxu0 %v886
      %977 = vmatprep.subr.bf16.mxu0 0
      %978 = vmatpush1.bf16.msra.mxu0 %v885
      %979 = vmatprep.subr.bf16.mxu0 0
      %980 = vmatpush1.bf16.msra.mxu0 %v884
      %981 = vmatprep.subr.bf16.mxu0 0
      %982 = vmatpush1.bf16.msra.mxu0 %v883
      %983 = vmatprep.subr.bf16.mxu0 0
      %984 = vmatpush1.bf16.msra.mxu0 %v882
      %985 = vmatprep.subr.bf16.mxu0 0
      %986 = vmatpush1.bf16.msra.mxu0 %v881
      %987 = vmatprep.subr.bf16.mxu0 0
      %988 = vmatpush1.bf16.msra.mxu0 %v880
      %989 = vmatprep.subr.bf16.mxu0 0
      %990 = vmatpush1.bf16.msra.mxu0 %v879
      %991 = vmatprep.subr.bf16.mxu0 0
      %992 = vmatpush2.bf16.msra.mxu0 %v894
      %993 = vmatprep.subr.bf16.mxu0 0
      %994 = vmatpush2.bf16.msra.mxu0 %v893
      %995 = vmatprep.subr.bf16.mxu0 0
      %996 = vmatpush2.bf16.msra.mxu0 %v892
      %997 = vmatprep.subr.bf16.mxu0 0
      %998 = vmatpush2.bf16.msra.mxu0 %v891
      %999 = vmatprep.subr.bf16.mxu0 0
      %1000 = vmatpush2.bf16.msra.mxu0 %v890
      %1001 = vmatprep.subr.bf16.mxu0 0
      %1002 = vmatpush2.bf16.msra.mxu0 %v889
      %1003 = vmatprep.subr.bf16.mxu0 0
      %1004 = vmatpush2.bf16.msra.mxu0 %v888
      %1005 = vmatprep.subr.bf16.mxu0 0
      %1006 = vmatpush2.bf16.msra.mxu0 %v887
      %1007 = vmatprep.mubr.bf16.mxu0 %v676
      %1008 = vmatmul.mubr.bf16.gmra.mxu0 %v675
      %v1009 = vpop.f32.mrf.mxu0
      %v1010 = vadd.f32 %v655, %v1009
      %v1011 = vpop.f32.mrf.mxu0
      %v1012 = vpop.f32.mrf.mxu0
      %v1013 = vadd.f32 %v655, %v1012
      %v1014 = vpop.f32.mrf.mxu0
      %1015 = vdwg.mxu0
      %1016 = vmatprep.subr.bf16.mxu0 0
      %1017 = vmatpush1.bf16.msra.mxu0 %v902
      %1018 = vmatprep.subr.bf16.mxu0 0
      %1019 = vmatpush1.bf16.msra.mxu0 %v901
      %1020 = vmatprep.subr.bf16.mxu0 0
      %1021 = vmatpush1.bf16.msra.mxu0 %v900
      %1022 = vmatprep.subr.bf16.mxu0 0
      %1023 = vmatpush1.bf16.msra.mxu0 %v899
      %1024 = vmatprep.subr.bf16.mxu0 0
      %1025 = vmatpush1.bf16.msra.mxu0 %v898
      %1026 = vmatprep.subr.bf16.mxu0 0
      %1027 = vmatpush1.bf16.msra.mxu0 %v897
      %1028 = vmatprep.subr.bf16.mxu0 0
      %1029 = vmatpush1.bf16.msra.mxu0 %v896
      %1030 = vmatprep.subr.bf16.mxu0 0
      %1031 = vmatpush1.bf16.msra.mxu0 %v895
      %1032 = vmatprep.subr.bf16.mxu0 0
      %1033 = vmatpush2.bf16.msra.mxu0 %v910
      %1034 = vmatprep.subr.bf16.mxu0 0
      %1035 = vmatpush2.bf16.msra.mxu0 %v909
      %1036 = vmatprep.subr.bf16.mxu0 0
      %1037 = vmatpush2.bf16.msra.mxu0 %v908
      %1038 = vmatprep.subr.bf16.mxu0 0
      %1039 = vmatpush2.bf16.msra.mxu0 %v907
      %1040 = vmatprep.subr.bf16.mxu0 0
      %1041 = vmatpush2.bf16.msra.mxu0 %v906
      %1042 = vmatprep.subr.bf16.mxu0 0
      %1043 = vmatpush2.bf16.msra.mxu0 %v905
      %1044 = vmatprep.subr.bf16.mxu0 0
      %1045 = vmatpush2.bf16.msra.mxu0 %v904
      %1046 = vmatprep.subr.bf16.mxu0 0
      %1047 = vmatpush2.bf16.msra.mxu0 %v903
      %1048 = vmatprep.mubr.bf16.mxu0 %v678
      %1049 = vmatmul.mubr.bf16.gmra.mxu0 %v677
      %v1050 = vpop.f32.mrf.mxu0
      %v1051 = vadd.f32 %v1010, %v1050
      %v1052 = vpop.f32.mrf.mxu0
      %v1053 = vpop.f32.mrf.mxu0
      %v1054 = vadd.f32 %v1013, %v1053
      %v1055 = vpop.f32.mrf.mxu0
      %1056 = vdwg.mxu0
      %1057 = vmatprep.subr.bf16.mxu0 0
      %1058 = vmatpush1.bf16.msra.mxu0 %v918
      %1059 = vmatprep.subr.bf16.mxu0 0
      %1060 = vmatpush1.bf16.msra.mxu0 %v917
      %1061 = vmatprep.subr.bf16.mxu0 0
      %1062 = vmatpush1.bf16.msra.mxu0 %v916
      %1063 = vmatprep.subr.bf16.mxu0 0
      %1064 = vmatpush1.bf16.msra.mxu0 %v915
      %1065 = vmatprep.subr.bf16.mxu0 0
      %1066 = vmatpush1.bf16.msra.mxu0 %v914
      %1067 = vmatprep.subr.bf16.mxu0 0
      %1068 = vmatpush1.bf16.msra.mxu0 %v913
      %1069 = vmatprep.subr.bf16.mxu0 0
      %1070 = vmatpush1.bf16.msra.mxu0 %v912
      %1071 = vmatprep.subr.bf16.mxu0 0
      %1072 = vmatpush1.bf16.msra.mxu0 %v911
      %1073 = vmatprep.subr.bf16.mxu0 0
      %1074 = vmatpush2.bf16.msra.mxu0 %v926
      %1075 = vmatprep.subr.bf16.mxu0 0
      %1076 = vmatpush2.bf16.msra.mxu0 %v925
      %1077 = vmatprep.subr.bf16.mxu0 0
      %1078 = vmatpush2.bf16.msra.mxu0 %v924
      %1079 = vmatprep.subr.bf16.mxu0 0
      %1080 = vmatpush2.bf16.msra.mxu0 %v923
      %1081 = vmatprep.subr.bf16.mxu0 0
      %1082 = vmatpush2.bf16.msra.mxu0 %v922
      %1083 = vmatprep.subr.bf16.mxu0 0
      %1084 = vmatpush2.bf16.msra.mxu0 %v921
      %1085 = vmatprep.subr.bf16.mxu0 0
      %1086 = vmatpush2.bf16.msra.mxu0 %v920
      %1087 = vmatprep.subr.bf16.mxu0 0
      %1088 = vmatpush2.bf16.msra.mxu0 %v919
      %1089 = vmatprep.mubr.bf16.mxu0 %v680
      %1090 = vmatmul.mubr.bf16.gmra.mxu0 %v679
      %v1091 = vpop.f32.mrf.mxu0
      %v1092 = vadd.f32 %v1051, %v1091
      %v1093 = vpop.f32.mrf.mxu0
      %v1094 = vpop.f32.mrf.mxu0
      %v1095 = vadd.f32 %v1054, %v1094
      %v1096 = vpop.f32.mrf.mxu0
      %1097 = vdwg.mxu0
      loop: start=0, step=1, limit=12
      $region89: #{featformer_forward.1} parent=87 // loop_pre_header
        _
      $region90: #{featformer_forward.1} parent=87 // loop_header
        %s1099 = sphi 0, %s1103
        %p1100 = scmp.ge.s32.totalorder %s1099, 12
        %v1104 = vphi %v1092, %v2287
        %v1105 = vphi %v1095, %v2288
      $region91: #{featformer_forward.1} parent=87 // loop_header_branch
        %1102 = sbr.rel (%p1100) target = $region95
      $region92: #{featformer_forward.1} parent=87 // loop_body
        %s1106 = scalar_lea.vmem %s3, %s1099
        %v1107 = vld [vmem:[%s1106] sm:$0x1]
        %s1108 = scalar_lea.vmem %s4, %s1099
        %v1109 = vld [vmem:[%s1108] sm:$0x1]
        %vm1110 = vcmask 523264
        %v1111 = vsel %vm1110, %v1104, 0.0
        %1112 = vadd.xlane.f32.xlu0 %v1111
        %v1113 = vpop.xlane.xlu0 %1112
        %v1114 = vsel %vm1110, %v1105, 0.0
        %1115 = vadd.xlane.f32.xlu0 %v1114
        %v1116 = vpop.xlane.xlu0 %1115
        %v1117 = vrcp.pop 64.0
        %v1118 = vmul.f32 %v1113, %v1117
        %v1119 = vmul.f32 %v1116, %v1117
        %v1120 = vsub.f32 %v1104, %v1118
        %v1121 = vsub.f32 %v1105, %v1119
        %v1122 = vmul.f32 %v1120, %v1120
        %v1123 = vmul.f32 %v1121, %v1121
        %v1124 = vsel %vm1110, %v1122, 0.0
        %1125 = vadd.xlane.f32.xlu0 %v1124
        %v1126 = vpop.xlane.xlu0 %1125
        %v1127 = vsel %vm1110, %v1123, 0.0
        %1128 = vadd.xlane.f32.xlu0 %v1127
        %v1129 = vpop.xlane.xlu0 %1128
        %v1130 = vmul.f32 %v1126, %v1117
        %v1131 = vmul.f32 %v1129, %v1117
        %v1132 = vadd.f32 %v1130, 1e-06
        %v1133 = vadd.f32 %v1131, 1e-06
        %v1134 = vrsqrt.pop %v1132
        %v1135 = vrsqrt.pop %v1133
        %v1136 = vmul.f32 %v1120, %v1134
        %v1137 = vmul.f32 %v1121, %v1135
        %v1139 = vlaneseq
        %v1140 = vshrl.u32 %v1139, 7
        %v1141 = vsub.s32 0, %v1140
        %v1142 = vrot.slane %v1107, %v1141
        %v1144 = vmul.f32 %v1136, %v1142
        %v1145 = vmul.f32 %v1137, %v1142
        %v1147 = vlaneseq
        %v1148 = vshrl.u32 %v1147, 7
        %v1149 = vsub.s32 0, %v1148
        %v1150 = vrot.slane %v1109, %v1149
        %v1152 = vadd.f32 %v1144, %v1150
        %v1153 = vadd.f32 %v1145, %v1150
        %v1154 = vpack.c.bf16 %v1153, %v1152
        %s1155 = smul.u32 %s1099, 16
        %s1156 = smul.addr %s1155, 4
        %s1157 = scalar_lea.vmem %s5, %s1156
        %v1158 = vld [vmem:[%s1157] sm:$0xff]
        %v1159 = vld [vmem:[%s1157 + $0x8] sm:$0xff]
        %v1160 = vld [vmem:[%s1157 + $0x10] sm:$0xff]
        %v1161 = vld [vmem:[%s1157 + $0x18] sm:$0xff]
        %v1162 = vld [vmem:[%s1157 + $0x20] sm:$0xff]
        %v1163 = vld [vmem:[%s1157 + $0x28] sm:$0xff]
        %v1164 = vld [vmem:[%s1157 + $0x30] sm:$0xff]
        %v1165 = vld [vmem:[%s1157 + $0x38] sm:$0xff]
        %s1166 = smul.u32 %s1099, 2
        %s1167 = scalar_lea.vmem %s6, %s1166
        %v1168 = vld [vmem:[%s1167] sm:$0x3]
        %v1170 = vlaneseq
        %v1171 = vshrl.u32 %v1170, 7
        %v1172 = vsub.s32 0, %v1171
        %v1173 = vrot.slane %v1168, %v1172
        %v1174 = vlaneseq
        %v1175 = vshrl.u32 %v1174, 7
        %v1176 = vsub.s32 1, %v1175
        %v1177 = vrot.slane %v1168, %v1176
        %v1188 = vunpack.c.l.b16 %v1158
        %v1189 = vunpack.c.h.b16 %v1158
        %v1190 = vunpack.c.l.b16 %v1159
        %v1191 = vunpack.c.h.b16 %v1159
        %v1192 = vunpack.c.l.b16 %v1160
        %v1193 = vunpack.c.h.b16 %v1160
        %v1194 = vunpack.c.l.b16 %v1161
        %v1195 = vunpack.c.h.b16 %v1161
        %v1196 = vunpack.c.l.b16 %v1162
        %v1197 = vunpack.c.h.b16 %v1162
        %v1198 = vunpack.c.l.b16 %v1163
        %v1199 = vunpack.c.h.b16 %v1163
        %v1200 = vunpack.c.l.b16 %v1164
        %v1201 = vunpack.c.h.b16 %v1164
        %v1202 = vunpack.c.l.b16 %v1165
        %v1203 = vunpack.c.h.b16 %v1165
        %v1204 = vpack.c.b16 %v1190, %v1188
        %v1205 = vpack.c.b16 %v1191, %v1189
        %v1206 = vpack.c.b16 %v1194, %v1192
        %v1207 = vpack.c.b16 %v1195, %v1193
        %v1208 = vpack.c.b16 %v1198, %v1196
        %v1209 = vpack.c.b16 %v1199, %v1197
        %v1210 = vpack.c.b16 %v1202, %v1200
        %v1211 = vpack.c.b16 %v1203, %v1201
        %v1221 = vsel %vm1110, %v1154, 0
        %1223 = vmatprep.subr.bf16.mxu0 0
        %1224 = vmatpush1.bf16.msra.mxu0 0
        %1225 = vmatprep.subr.bf16.mxu0 0
        %1226 = vmatpush1.bf16.msra.mxu0 0
        %1227 = vmatprep.subr.bf16.mxu0 0
        %1228 = vmatpush1.bf16.msra.mxu0 0
        %1229 = vmatprep.subr.bf16.mxu0 0
        %1230 = vmatpush1.bf16.msra.mxu0 0
        %1231 = vmatprep.subr.bf16.mxu0 %v1211
        %1232 = vmatpush1.bf16.msra.mxu0 %v1210
        %1233 = vmatprep.subr.bf16.mxu0 %v1209
        %1234 = vmatpush1.bf16.msra.mxu0 %v1208
        %1235 = vmatprep.subr.bf16.mxu0 %v1207
        %1236 = vmatpush1.bf16.msra.mxu0 %v1206
        %1237 = vmatprep.subr.bf16.mxu0 %v1205
        %1238 = vmatpush1.bf16.msra.mxu0 %v1204
        %1239 = vmatprep.subr.bf16.mxu0 0
        %1240 = vmatpush2.bf16.msra.mxu0 0
        %1241 = vmatprep.subr.bf16.mxu0 0
        %1242 = vmatpush2.bf16.msra.mxu0 0
        %1243 = vmatprep.subr.bf16.mxu0 0
        %1244 = vmatpush2.bf16.msra.mxu0 0
        %1245 = vmatprep.subr.bf16.mxu0 0
        %1246 = vmatpush2.bf16.msra.mxu0 0
        %1247 = vmatprep.subr.bf16.mxu0 0
        %1248 = vmatpush2.bf16.msra.mxu0 0
        %1249 = vmatprep.subr.bf16.mxu0 0
        %1250 = vmatpush2.bf16.msra.mxu0 0
        %1251 = vmatprep.subr.bf16.mxu0 0
        %1252 = vmatpush2.bf16.msra.mxu0 0
        %1253 = vmatprep.subr.bf16.mxu0 0
        %1254 = vmatpush2.bf16.msra.mxu0 0
        %1255 = vmatprep.mubr.bf16.mxu0 0
        %1256 = vmatmul.mubr.bf16.gmra.mxu0 %v1221
        %v1257 = vpop.f32.mrf.mxu0
        %v1258 = vadd.f32 %v1173, %v1257
        %v1259 = vpop.f32.mrf.mxu0
        %v1260 = vadd.f32 %v1177, %v1259
        %v1261 = vpop.f32.mrf.mxu0
        %v1262 = vadd.f32 %v1173, %v1261
        %v1263 = vpop.f32.mrf.mxu0
        %v1264 = vadd.f32 %v1177, %v1263
        %1265 = vdwg.mxu0
        %1268 = vrot.lane.b32.xlu0 %v1258, 112
        %v1269 = vpop.permute.xlu0 %1268
        %1270 = vrot.lane.b32.xlu0 %v1262, 112
        %v1271 = vpop.permute.xlu0 %1270
        %1274 = vrot.lane.b32.xlu0 %v1258, 96
        %v1275 = vpop.permute.xlu0 %1274
        %1276 = vrot.lane.b32.xlu0 %v1262, 96
        %v1277 = vpop.permute.xlu0 %1276
        %1280 = vrot.lane.b32.xlu0 %v1258, 80
        %v1281 = vpop.permute.xlu0 %1280
        %1282 = vrot.lane.b32.xlu0 %v1262, 80
        %v1283 = vpop.permute.xlu0 %1282
        %v1286 = vpack.c.bf16 %v1262, %v1258
        %v1287 = vpack.c.bf16 %v1271, %v1269
        %v1288 = vpack.c.bf16 %v1277, %v1275
        %v1289 = vpack.c.bf16 %v1283, %v1281
        %1292 = vrot.lane.b32.xlu0 %v1260, 112
        %v1293 = vpop.permute.xlu0 %1292
        %1294 = vrot.lane.b32.xlu0 %v1264, 112
        %v1295 = vpop.permute.xlu0 %1294
        %1298 = vrot.lane.b32.xlu0 %v1260, 96
        %v1299 = vpop.permute.xlu0 %1298
        %1300 = vrot.lane.b32.xlu0 %v1264, 96
        %v1301 = vpop.permute.xlu0 %1300
        %1304 = vrot.lane.b32.xlu0 %v1260, 80
        %v1305 = vpop.permute.xlu0 %1304
        %1306 = vrot.lane.b32.xlu0 %v1264, 80
        %v1307 = vpop.permute.xlu0 %1306
        %v1310 = vpack.c.bf16 %v1264, %v1260
        %v1311 = vpack.c.bf16 %v1295, %v1293
        %v1312 = vpack.c.bf16 %v1301, %v1299
        %v1313 = vpack.c.bf16 %v1307, %v1305
        %1315 = vrot.lane.b32.xlu0 %v1286, 64
        %v1316 = vpop.permute.xlu0 %1315
        %vm1317 = vcmask 130048
        %v1319 = vsel %vm1317, %v1286, 0
        %v1322 = vsel %vm1317, %v1316, 0
        %1324 = vmatprep.subr.bf16.mxu0 0
        %1325 = vmatpush1.bf16.xpose.msra.mxu0 0
        %1326 = vmatprep.subr.bf16.mxu0 0
        %1327 = vmatpush1.bf16.xpose.msra.mxu0 0
        %1328 = vmatprep.subr.bf16.mxu0 0
        %1329 = vmatpush1.bf16.xpose.msra.mxu0 0
        %1330 = vmatprep.subr.bf16.mxu0 0
        %1331 = vmatpush1.bf16.xpose.msra.mxu0 0
        %1332 = vmatprep.subr.bf16.mxu0 0
        %1333 = vmatpush1.bf16.xpose.msra.mxu0 0
        %1334 = vmatprep.subr.bf16.mxu0 0
        %1335 = vmatpush1.bf16.xpose.msra.mxu0 0
        %1336 = vmatprep.subr.bf16.mxu0 0
        %1337 = vmatpush1.bf16.xpose.msra.mxu0 0
        %1338 = vmatprep.subr.bf16.mxu0 0
        %1339 = vmatpush1.bf16.xpose.msra.mxu0 %v1322
        %1340 = vmatprep.subr.bf16.mxu0 0
        %1341 = vmatpush2.bf16.xpose.msra.mxu0 0
        %1342 = vmatprep.subr.bf16.mxu0 0
        %1343 = vmatpush2.bf16.xpose.msra.mxu0 0
        %1344 = vmatprep.subr.bf16.mxu0 0
        %1345 = vmatpush2.bf16.xpose.msra.mxu0 0
        %1346 = vmatprep.subr.bf16.mxu0 0
        %1347 = vmatpush2.bf16.xpose.msra.mxu0 0
        %1348 = vmatprep.subr.bf16.mxu0 0
        %1349 = vmatpush2.bf16.xpose.msra.mxu0 0
        %1350 = vmatprep.subr.bf16.mxu0 0
        %1351 = vmatpush2.bf16.xpose.msra.mxu0 0
        %1352 = vmatprep.subr.bf16.mxu0 0
        %1353 = vmatpush2.bf16.xpose.msra.mxu0 0
        %1354 = vmatprep.subr.bf16.mxu0 0
        %1355 = vmatpush2.bf16.xpose.msra.mxu0 0
        %1356 = vmatprep.mubr.bf16.mxu0 0
        %1357 = vmatmul.mubr.bf16.gmra.mxu0 %v1319
        %v1358 = vpop.f32.mrf.mxu0
        %v1359 = vadd.f32 0.0, %v1358
        %v1360 = vpop.f32.mrf.mxu0
        %v1361 = vpop.f32.mrf.mxu0
        %v1362 = vadd.f32 0.0, %v1361
        %v1363 = vpop.f32.mrf.mxu0
        %1364 = vdwg.mxu0
        %1366 = vrot.lane.b32.xlu0 %v1287, 64
        %v1367 = vpop.permute.xlu0 %1366
        %v1369 = vsel %vm1317, %v1287, 0
        %v1372 = vsel %vm1317, %v1367, 0
        %1374 = vmatprep.subr.bf16.mxu0 0
        %1375 = vmatpush1.bf16.xpose.msra.mxu0 0
        %1376 = vmatprep.subr.bf16.mxu0 0
        %1377 = vmatpush1.bf16.xpose.msra.mxu0 0
        %1378 = vmatprep.subr.bf16.mxu0 0
        %1379 = vmatpush1.bf16.xpose.msra.mxu0 0
        %1380 = vmatprep.subr.bf16.mxu0 0
        %1381 = vmatpush1.bf16.xpose.msra.mxu0 0
        %1382 = vmatprep.subr.bf16.mxu0 0
        %1383 = vmatpush1.bf16.xpose.msra.mxu0 0
        %1384 = vmatprep.subr.bf16.mxu0 0
        %1385 = vmatpush1.bf16.xpose.msra.mxu0 0
        %1386 = vmatprep.subr.bf16.mxu0 0
        %1387 = vmatpush1.bf16.xpose.msra.mxu0 0
        %1388 = vmatprep.subr.bf16.mxu0 0
        %1389 = vmatpush1.bf16.xpose.msra.mxu0 %v1372
        %1390 = vmatprep.subr.bf16.mxu0 0
        %1391 = vmatpush2.bf16.xpose.msra.mxu0 0
        %1392 = vmatprep.subr.bf16.mxu0 0
        %1393 = vmatpush2.bf16.xpose.msra.mxu0 0
        %1394 = vmatprep.subr.bf16.mxu0 0
        %1395 = vmatpush2.bf16.xpose.msra.mxu0 0
        %1396 = vmatprep.subr.bf16.mxu0 0
        %1397 = vmatpush2.bf16.xpose.msra.mxu0 0
        %1398 = vmatprep.subr.bf16.mxu0 0
        %1399 = vmatpush2.bf16.xpose.msra.mxu0 0
        %1400 = vmatprep.subr.bf16.mxu0 0
        %1401 = vmatpush2.bf16.xpose.msra.mxu0 0
        %1402 = vmatprep.subr.bf16.mxu0 0
        %1403 = vmatpush2.bf16.xpose.msra.mxu0 0
        %1404 = vmatprep.subr.bf16.mxu0 0
        %1405 = vmatpush2.bf16.xpose.msra.mxu0 0
        %1406 = vmatprep.mubr.bf16.mxu0 0
        %1407 = vmatmul.mubr.bf16.gmra.mxu0 %v1369
        %v1408 = vpop.f32.mrf.mxu0
        %v1409 = vadd.f32 0.0, %v1408
        %v1410 = vpop.f32.mrf.mxu0
        %v1411 = vpop.f32.mrf.mxu0
        %v1412 = vadd.f32 0.0, %v1411
        %v1413 = vpop.f32.mrf.mxu0
        %1414 = vdwg.mxu0
        %1416 = vrot.lane.b32.xlu0 %v1288, 64
        %v1417 = vpop.permute.xlu0 %1416
        %v1419 = vsel %vm1317, %v1288, 0
        %v1422 = vsel %vm1317, %v1417, 0
        %1424 = vmatprep.subr.bf16.mxu0 0
        %1425 = vmatpush1.bf16.xpose.msra.mxu0 0
        %1426 = vmatprep.subr.bf16.mxu0 0
        %1427 = vmatpush1.bf16.xpose.msra.mxu0 0
        %1428 = vmatprep.subr.bf16.mxu0 0
        %1429 = vmatpush1.bf16.xpose.msra.mxu0 0
        %1430 = vmatprep.subr.bf16.mxu0 0
        %1431 = vmatpush1.bf16.xpose.msra.mxu0 0
        %1432 = vmatprep.subr.bf16.mxu0 0
        %1433 = vmatpush1.bf16.xpose.msra.mxu0 0
        %1434 = vmatprep.subr.bf16.mxu0 0
        %1435 = vmatpush1.bf16.xpose.msra.mxu0 0
        %1436 = vmatprep.subr.bf16.mxu0 0
        %1437 = vmatpush1.bf16.xpose.msra.mxu0 0
        %1438 = vmatprep.subr.bf16.mxu0 0
        %1439 = vmatpush1.bf16.xpose.msra.mxu0 %v1422
        %1440 = vmatprep.subr.bf16.mxu0 0
        %1441 = vmatpush2.bf16.xpose.msra.mxu0 0
        %1442 = vmatprep.subr.bf16.mxu0 0
        %1443 = vmatpush2.bf16.xpose.msra.mxu0 0
        %1444 = vmatprep.subr.bf16.mxu0 0
        %1445 = vmatpush2.bf16.xpose.msra.mxu0 0
        %1446 = vmatprep.subr.bf16.mxu0 0
        %1447 = vmatpush2.bf16.xpose.msra.mxu0 0
        %1448 = vmatprep.subr.bf16.mxu0 0
        %1449 = vmatpush2.bf16.xpose.msra.mxu0 0
        %1450 = vmatprep.subr.bf16.mxu0 0
        %1451 = vmatpush2.bf16.xpose.msra.mxu0 0
        %1452 = vmatprep.subr.bf16.mxu0 0
        %1453 = vmatpush2.bf16.xpose.msra.mxu0 0
        %1454 = vmatprep.subr.bf16.mxu0 0
        %1455 = vmatpush2.bf16.xpose.msra.mxu0 0
        %1456 = vmatprep.mubr.bf16.mxu0 0
        %1457 = vmatmul.mubr.bf16.gmra.mxu0 %v1419
        %v1458 = vpop.f32.mrf.mxu0
        %v1459 = vadd.f32 0.0, %v1458
        %v1460 = vpop.f32.mrf.mxu0
        %v1461 = vpop.f32.mrf.mxu0
        %v1462 = vadd.f32 0.0, %v1461
        %v1463 = vpop.f32.mrf.mxu0
        %1464 = vdwg.mxu0
        %1466 = vrot.lane.b32.xlu0 %v1289, 64
        %v1467 = vpop.permute.xlu0 %1466
        %v1469 = vsel %vm1317, %v1289, 0
        %v1472 = vsel %vm1317, %v1467, 0
        %1474 = vmatprep.subr.bf16.mxu0 0
        %1475 = vmatpush1.bf16.xpose.msra.mxu0 0
        %1476 = vmatprep.subr.bf16.mxu0 0
        %1477 = vmatpush1.bf16.xpose.msra.mxu0 0
        %1478 = vmatprep.subr.bf16.mxu0 0
        %1479 = vmatpush1.bf16.xpose.msra.mxu0 0
        %1480 = vmatprep.subr.bf16.mxu0 0
        %1481 = vmatpush1.bf16.xpose.msra.mxu0 0
        %1482 = vmatprep.subr.bf16.mxu0 0
        %1483 = vmatpush1.bf16.xpose.msra.mxu0 0
        %1484 = vmatprep.subr.bf16.mxu0 0
        %1485 = vmatpush1.bf16.xpose.msra.mxu0 0
        %1486 = vmatprep.subr.bf16.mxu0 0
        %1487 = vmatpush1.bf16.xpose.msra.mxu0 0
        %1488 = vmatprep.subr.bf16.mxu0 0
        %1489 = vmatpush1.bf16.xpose.msra.mxu0 %v1472
        %1490 = vmatprep.subr.bf16.mxu0 0
        %1491 = vmatpush2.bf16.xpose.msra.mxu0 0
        %1492 = vmatprep.subr.bf16.mxu0 0
        %1493 = vmatpush2.bf16.xpose.msra.mxu0 0
        %1494 = vmatprep.subr.bf16.mxu0 0
        %1495 = vmatpush2.bf16.xpose.msra.mxu0 0
        %1496 = vmatprep.subr.bf16.mxu0 0
        %1497 = vmatpush2.bf16.xpose.msra.mxu0 0
        %1498 = vmatprep.subr.bf16.mxu0 0
        %1499 = vmatpush2.bf16.xpose.msra.mxu0 0
        %1500 = vmatprep.subr.bf16.mxu0 0
        %1501 = vmatpush2.bf16.xpose.msra.mxu0 0
        %1502 = vmatprep.subr.bf16.mxu0 0
        %1503 = vmatpush2.bf16.xpose.msra.mxu0 0
        %1504 = vmatprep.subr.bf16.mxu0 0
        %1505 = vmatpush2.bf16.xpose.msra.mxu0 0
        %1506 = vmatprep.mubr.bf16.mxu0 0
        %1507 = vmatmul.mubr.bf16.gmra.mxu0 %v1469
        %v1508 = vpop.f32.mrf.mxu0
        %v1509 = vadd.f32 0.0, %v1508
        %v1510 = vpop.f32.mrf.mxu0
        %v1511 = vpop.f32.mrf.mxu0
        %v1512 = vadd.f32 0.0, %v1511
        %v1513 = vpop.f32.mrf.mxu0
        %1514 = vdwg.mxu0
        %v1515 = vmul.f32 %v1359, 0.25
        %v1516 = vmul.f32 %v1362, 0.25
        %v1517 = vmul.f32 %v1409, 0.25
        %v1518 = vmul.f32 %v1412, 0.25
        %v1519 = vmul.f32 %v1459, 0.25
        %v1520 = vmul.f32 %v1462, 0.25
        %v1521 = vmul.f32 %v1509, 0.25
        %v1522 = vmul.f32 %v1512, 0.25
        %v1523 = vsel %vm1317, %v1515, -inf
        %1524 = vmax.xlane.f32.xlu0 %v1523
        %v1525 = vpop.xlane.xlu0 %1524
        %v1526 = vsel %vm1317, %v1516, -inf
        %1527 = vmax.xlane.f32.xlu0 %v1526
        %v1528 = vpop.xlane.xlu0 %1527
        %v1529 = vsel %vm1317, %v1517, -inf
        %1530 = vmax.xlane.f32.xlu0 %v1529
        %v1531 = vpop.xlane.xlu0 %1530
        %v1532 = vsel %vm1317, %v1518, -inf
        %1533 = vmax.xlane.f32.xlu0 %v1532
        %v1534 = vpop.xlane.xlu0 %1533
        %v1535 = vsel %vm1317, %v1519, -inf
        %1536 = vmax.xlane.f32.xlu0 %v1535
        %v1537 = vpop.xlane.xlu0 %1536
        %v1538 = vsel %vm1317, %v1520, -inf
        %1539 = vmax.xlane.f32.xlu0 %v1538
        %v1540 = vpop.xlane.xlu0 %1539
        %v1541 = vsel %vm1317, %v1521, -inf
        %1542 = vmax.xlane.f32.xlu0 %v1541
        %v1543 = vpop.xlane.xlu0 %1542
        %v1544 = vsel %vm1317, %v1522, -inf
        %1545 = vmax.xlane.f32.xlu0 %v1544
        %v1546 = vpop.xlane.xlu0 %1545
        %v1547 = vsub.f32 %v1515, %v1525
        %v1548 = vsub.f32 %v1516, %v1528
        %v1549 = vsub.f32 %v1517, %v1531
        %v1550 = vsub.f32 %v1518, %v1534
        %v1551 = vsub.f32 %v1519, %v1537
        %v1552 = vsub.f32 %v1520, %v1540
        %v1553 = vsub.f32 %v1521, %v1543
        %v1554 = vsub.f32 %v1522, %v1546
        %v1555 = vmul.f32 %v1547, 1.442695
        %v1556 = vpow.pop %v1555
        %v1557 = vmul.f32 %v1548, 1.442695
        %v1558 = vpow.pop %v1557
        %v1559 = vmul.f32 %v1549, 1.442695
        %v1560 = vpow.pop %v1559
        %v1561 = vmul.f32 %v1550, 1.442695
        %v1562 = vpow.pop %v1561
        %v1563 = vmul.f32 %v1551, 1.442695
        %v1564 = vpow.pop %v1563
        %v1565 = vmul.f32 %v1552, 1.442695
        %v1566 = vpow.pop %v1565
        %v1567 = vmul.f32 %v1553, 1.442695
        %v1568 = vpow.pop %v1567
        %v1569 = vmul.f32 %v1554, 1.442695
        %v1570 = vpow.pop %v1569
        %v1571 = vsel %vm1317, %v1556, 0.0
        %1572 = vadd.xlane.f32.xlu0 %v1571
        %v1573 = vpop.xlane.xlu0 %1572
        %v1574 = vsel %vm1317, %v1558, 0.0
        %1575 = vadd.xlane.f32.xlu0 %v1574
        %v1576 = vpop.xlane.xlu0 %1575
        %v1577 = vsel %vm1317, %v1560, 0.0
        %1578 = vadd.xlane.f32.xlu0 %v1577
        %v1579 = vpop.xlane.xlu0 %1578
        %v1580 = vsel %vm1317, %v1562, 0.0
        %1581 = vadd.xlane.f32.xlu0 %v1580
        %v1582 = vpop.xlane.xlu0 %1581
        %v1583 = vsel %vm1317, %v1564, 0.0
        %1584 = vadd.xlane.f32.xlu0 %v1583
        %v1585 = vpop.xlane.xlu0 %1584
        %v1586 = vsel %vm1317, %v1566, 0.0
        %1587 = vadd.xlane.f32.xlu0 %v1586
        %v1588 = vpop.xlane.xlu0 %1587
        %v1589 = vsel %vm1317, %v1568, 0.0
        %1590 = vadd.xlane.f32.xlu0 %v1589
        %v1591 = vpop.xlane.xlu0 %1590
        %v1592 = vsel %vm1317, %v1570, 0.0
        %1593 = vadd.xlane.f32.xlu0 %v1592
        %v1594 = vpop.xlane.xlu0 %1593
        %v1595 = vrcp.pop %v1573
        %v1596 = vrcp.pop %v1576
        %v1597 = vrcp.pop %v1579
        %v1598 = vrcp.pop %v1582
        %v1599 = vrcp.pop %v1585
        %v1600 = vrcp.pop %v1588
        %v1601 = vrcp.pop %v1591
        %v1602 = vrcp.pop %v1594
        %v1603 = vmul.f32 %v1556, %v1595
        %v1604 = vmul.f32 %v1558, %v1596
        %v1605 = vmul.f32 %v1560, %v1597
        %v1606 = vmul.f32 %v1562, %v1598
        %v1607 = vmul.f32 %v1564, %v1599
        %v1608 = vmul.f32 %v1566, %v1600
        %v1609 = vmul.f32 %v1568, %v1601
        %v1610 = vmul.f32 %v1570, %v1602
        %v1611 = vpack.c.bf16 %v1604, %v1603
        %v1612 = vpack.c.bf16 %v1606, %v1605
        %v1613 = vpack.c.bf16 %v1608, %v1607
        %v1614 = vpack.c.bf16 %v1610, %v1609
        %v1616 = vsel %vm1317, %v1611, 0
        %1618 = vmatprep.subr.bf16.mxu0 0
        %1619 = vmatpush1.bf16.msra.mxu0 0
        %1620 = vmatprep.subr.bf16.mxu0 0
        %1621 = vmatpush1.bf16.msra.mxu0 0
        %1622 = vmatprep.subr.bf16.mxu0 0
        %1623 = vmatpush1.bf16.msra.mxu0 0
        %1624 = vmatprep.subr.bf16.mxu0 0
        %1625 = vmatpush1.bf16.msra.mxu0 0
        %1626 = vmatprep.subr.bf16.mxu0 0
        %1627 = vmatpush1.bf16.msra.mxu0 0
        %1628 = vmatprep.subr.bf16.mxu0 0
        %1629 = vmatpush1.bf16.msra.mxu0 0
        %1630 = vmatprep.subr.bf16.mxu0 0
        %1631 = vmatpush1.bf16.msra.mxu0 0
        %1632 = vmatprep.subr.bf16.mxu0 0
        %1633 = vmatpush1.bf16.msra.mxu0 %v1310
        %1634 = vmatprep.subr.bf16.mxu0 0
        %1635 = vmatpush2.bf16.msra.mxu0 0
        %1636 = vmatprep.subr.bf16.mxu0 0
        %1637 = vmatpush2.bf16.msra.mxu0 0
        %1638 = vmatprep.subr.bf16.mxu0 0
        %1639 = vmatpush2.bf16.msra.mxu0 0
        %1640 = vmatprep.subr.bf16.mxu0 0
        %1641 = vmatpush2.bf16.msra.mxu0 0
        %1642 = vmatprep.subr.bf16.mxu0 0
        %1643 = vmatpush2.bf16.msra.mxu0 0
        %1644 = vmatprep.subr.bf16.mxu0 0
        %1645 = vmatpush2.bf16.msra.mxu0 0
        %1646 = vmatprep.subr.bf16.mxu0 0
        %1647 = vmatpush2.bf16.msra.mxu0 0
        %1648 = vmatprep.subr.bf16.mxu0 0
        %1649 = vmatpush2.bf16.msra.mxu0 0
        %1650 = vmatprep.mubr.bf16.mxu0 0
        %1651 = vmatmul.mubr.bf16.gmra.mxu0 %v1616
        %v1652 = vpop.f32.mrf.mxu0
        %v1653 = vadd.f32 0.0, %v1652
        %v1654 = vpop.f32.mrf.mxu0
        %v1655 = vpop.f32.mrf.mxu0
        %v1656 = vadd.f32 0.0, %v1655
        %v1657 = vpop.f32.mrf.mxu0
        %1658 = vdwg.mxu0
        %v1660 = vsel %vm1317, %v1612, 0
        %1662 = vmatprep.subr.bf16.mxu0 0
        %1663 = vmatpush1.bf16.msra.mxu0 0
        %1664 = vmatprep.subr.bf16.mxu0 0
        %1665 = vmatpush1.bf16.msra.mxu0 0
        %1666 = vmatprep.subr.bf16.mxu0 0
        %1667 = vmatpush1.bf16.msra.mxu0 0
        %1668 = vmatprep.subr.bf16.mxu0 0
        %1669 = vmatpush1.bf16.msra.mxu0 0
        %1670 = vmatprep.subr.bf16.mxu0 0
        %1671 = vmatpush1.bf16.msra.mxu0 0
        %1672 = vmatprep.subr.bf16.mxu0 0
        %1673 = vmatpush1.bf16.msra.mxu0 0
        %1674 = vmatprep.subr.bf16.mxu0 0
        %1675 = vmatpush1.bf16.msra.mxu0 0
        %1676 = vmatprep.subr.bf16.mxu0 0
        %1677 = vmatpush1.bf16.msra.mxu0 %v1311
        %1678 = vmatprep.subr.bf16.mxu0 0
        %1679 = vmatpush2.bf16.msra.mxu0 0
        %1680 = vmatprep.subr.bf16.mxu0 0
        %1681 = vmatpush2.bf16.msra.mxu0 0
        %1682 = vmatprep.subr.bf16.mxu0 0
        %1683 = vmatpush2.bf16.msra.mxu0 0
        %1684 = vmatprep.subr.bf16.mxu0 0
        %1685 = vmatpush2.bf16.msra.mxu0 0
        %1686 = vmatprep.subr.bf16.mxu0 0
        %1687 = vmatpush2.bf16.msra.mxu0 0
        %1688 = vmatprep.subr.bf16.mxu0 0
        %1689 = vmatpush2.bf16.msra.mxu0 0
        %1690 = vmatprep.subr.bf16.mxu0 0
        %1691 = vmatpush2.bf16.msra.mxu0 0
        %1692 = vmatprep.subr.bf16.mxu0 0
        %1693 = vmatpush2.bf16.msra.mxu0 0
        %1694 = vmatprep.mubr.bf16.mxu0 0
        %1695 = vmatmul.mubr.bf16.gmra.mxu0 %v1660
        %v1696 = vpop.f32.mrf.mxu0
        %v1697 = vadd.f32 0.0, %v1696
        %v1698 = vpop.f32.mrf.mxu0
        %v1699 = vpop.f32.mrf.mxu0
        %v1700 = vadd.f32 0.0, %v1699
        %v1701 = vpop.f32.mrf.mxu0
        %1702 = vdwg.mxu0
        %v1704 = vsel %vm1317, %v1613, 0
        %1706 = vmatprep.subr.bf16.mxu0 0
        %1707 = vmatpush1.bf16.msra.mxu0 0
        %1708 = vmatprep.subr.bf16.mxu0 0
        %1709 = vmatpush1.bf16.msra.mxu0 0
        %1710 = vmatprep.subr.bf16.mxu0 0
        %1711 = vmatpush1.bf16.msra.mxu0 0
        %1712 = vmatprep.subr.bf16.mxu0 0
        %1713 = vmatpush1.bf16.msra.mxu0 0
        %1714 = vmatprep.subr.bf16.mxu0 0
        %1715 = vmatpush1.bf16.msra.mxu0 0
        %1716 = vmatprep.subr.bf16.mxu0 0
        %1717 = vmatpush1.bf16.msra.mxu0 0
        %1718 = vmatprep.subr.bf16.mxu0 0
        %1719 = vmatpush1.bf16.msra.mxu0 0
        %1720 = vmatprep.subr.bf16.mxu0 0
        %1721 = vmatpush1.bf16.msra.mxu0 %v1312
        %1722 = vmatprep.subr.bf16.mxu0 0
        %1723 = vmatpush2.bf16.msra.mxu0 0
        %1724 = vmatprep.subr.bf16.mxu0 0
        %1725 = vmatpush2.bf16.msra.mxu0 0
        %1726 = vmatprep.subr.bf16.mxu0 0
        %1727 = vmatpush2.bf16.msra.mxu0 0
        %1728 = vmatprep.subr.bf16.mxu0 0
        %1729 = vmatpush2.bf16.msra.mxu0 0
        %1730 = vmatprep.subr.bf16.mxu0 0
        %1731 = vmatpush2.bf16.msra.mxu0 0
        %1732 = vmatprep.subr.bf16.mxu0 0
        %1733 = vmatpush2.bf16.msra.mxu0 0
        %1734 = vmatprep.subr.bf16.mxu0 0
        %1735 = vmatpush2.bf16.msra.mxu0 0
        %1736 = vmatprep.subr.bf16.mxu0 0
        %1737 = vmatpush2.bf16.msra.mxu0 0
        %1738 = vmatprep.mubr.bf16.mxu0 0
        %1739 = vmatmul.mubr.bf16.gmra.mxu0 %v1704
        %v1740 = vpop.f32.mrf.mxu0
        %v1741 = vadd.f32 0.0, %v1740
        %v1742 = vpop.f32.mrf.mxu0
        %v1743 = vpop.f32.mrf.mxu0
        %v1744 = vadd.f32 0.0, %v1743
        %v1745 = vpop.f32.mrf.mxu0
        %1746 = vdwg.mxu0
        %v1748 = vsel %vm1317, %v1614, 0
        %1750 = vmatprep.subr.bf16.mxu0 0
        %1751 = vmatpush1.bf16.msra.mxu0 0
        %1752 = vmatprep.subr.bf16.mxu0 0
        %1753 = vmatpush1.bf16.msra.mxu0 0
        %1754 = vmatprep.subr.bf16.mxu0 0
        %1755 = vmatpush1.bf16.msra.mxu0 0
        %1756 = vmatprep.subr.bf16.mxu0 0
        %1757 = vmatpush1.bf16.msra.mxu0 0
        %1758 = vmatprep.subr.bf16.mxu0 0
        %1759 = vmatpush1.bf16.msra.mxu0 0
        %1760 = vmatprep.subr.bf16.mxu0 0
        %1761 = vmatpush1.bf16.msra.mxu0 0
        %1762 = vmatprep.subr.bf16.mxu0 0
        %1763 = vmatpush1.bf16.msra.mxu0 0
        %1764 = vmatprep.subr.bf16.mxu0 0
        %1765 = vmatpush1.bf16.msra.mxu0 %v1313
        %1766 = vmatprep.subr.bf16.mxu0 0
        %1767 = vmatpush2.bf16.msra.mxu0 0
        %1768 = vmatprep.subr.bf16.mxu0 0
        %1769 = vmatpush2.bf16.msra.mxu0 0
        %1770 = vmatprep.subr.bf16.mxu0 0
        %1771 = vmatpush2.bf16.msra.mxu0 0
        %1772 = vmatprep.subr.bf16.mxu0 0
        %1773 = vmatpush2.bf16.msra.mxu0 0
        %1774 = vmatprep.subr.bf16.mxu0 0
        %1775 = vmatpush2.bf16.msra.mxu0 0
        %1776 = vmatprep.subr.bf16.mxu0 0
        %1777 = vmatpush2.bf16.msra.mxu0 0
        %1778 = vmatprep.subr.bf16.mxu0 0
        %1779 = vmatpush2.bf16.msra.mxu0 0
        %1780 = vmatprep.subr.bf16.mxu0 0
        %1781 = vmatpush2.bf16.msra.mxu0 0
        %1782 = vmatprep.mubr.bf16.mxu0 0
        %1783 = vmatmul.mubr.bf16.gmra.mxu0 %v1748
        %v1784 = vpop.f32.mrf.mxu0
        %v1785 = vadd.f32 0.0, %v1784
        %v1786 = vpop.f32.mrf.mxu0
        %v1787 = vpop.f32.mrf.mxu0
        %v1788 = vadd.f32 0.0, %v1787
        %v1789 = vpop.f32.mrf.mxu0
        %1790 = vdwg.mxu0
        %1793 = vrot.lane.b32.xlu0 %v1697, 16
        %v1794 = vpop.permute.xlu0 %1793
        %1795 = vrot.lane.b32.xlu0 %v1700, 16
        %v1796 = vpop.permute.xlu0 %1795
        %1801 = vrot.lane.b32.xlu0 %v1741, 32
        %v1802 = vpop.permute.xlu0 %1801
        %1803 = vrot.lane.b32.xlu0 %v1744, 32
        %v1804 = vpop.permute.xlu0 %1803
        %1809 = vrot.lane.b32.xlu0 %v1785, 48
        %v1810 = vpop.permute.xlu0 %1809
        %1811 = vrot.lane.b32.xlu0 %v1788, 48
        %v1812 = vpop.permute.xlu0 %1811
        %v1815 = vsel %vm1317, %v1653, %v1794
        %v1816 = vsel %vm1317, %v1656, %v1796
        %vm1817 = vcmask 261120
        %v1818 = vsel %vm1817, %v1815, %v1802
        %v1819 = vsel %vm1817, %v1816, %v1804
        %vm1820 = vcmask 392192
        %v1821 = vsel %vm1820, %v1818, %v1810
        %v1822 = vsel %vm1820, %v1819, %v1812
        %v1823 = vpack.c.bf16 %v1822, %v1821
        %s1824 = smul.u32 %s1099, 8
        %s1825 = smul.addr %s1824, 4
        %s1826 = scalar_lea.vmem %s7, %s1825
        %v1827 = vld [vmem:[%s1826] sm:$0xf]
        %v1828 = vld [vmem:[%s1826 + $0x4] sm:$0xf]
        %v1829 = vld [vmem:[%s1826 + $0x8] sm:$0xf]
        %v1830 = vld [vmem:[%s1826 + $0xc] sm:$0xf]
        %v1831 = vld [vmem:[%s1826 + $0x10] sm:$0xf]
        %v1832 = vld [vmem:[%s1826 + $0x14] sm:$0xf]
        %v1833 = vld [vmem:[%s1826 + $0x18] sm:$0xf]
        %v1834 = vld [vmem:[%s1826 + $0x1c] sm:$0xf]
        %s1835 = scalar_lea.vmem %s8, %s1099
        %v1836 = vld [vmem:[%s1835] sm:$0x1]
        %v1838 = vlaneseq
        %v1839 = vshrl.u32 %v1838, 7
        %v1840 = vsub.s32 0, %v1839
        %v1841 = vrot.slane %v1836, %v1840
        %v1851 = vunpack.c.l.b16 %v1827
        %v1852 = vunpack.c.l.b16 %v1828
        %v1853 = vunpack.c.l.b16 %v1829
        %v1854 = vunpack.c.l.b16 %v1830
        %v1855 = vunpack.c.l.b16 %v1831
        %v1856 = vunpack.c.l.b16 %v1832
        %v1857 = vunpack.c.l.b16 %v1833
        %v1858 = vunpack.c.l.b16 %v1834
        %v1859 = vpack.c.b16 %v1852, %v1851
        %v1860 = vpack.c.b16 %v1854, %v1853
        %v1861 = vpack.c.b16 %v1856, %v1855
        %v1862 = vpack.c.b16 %v1858, %v1857
        %v1868 = vsel %vm1110, %v1823, 0
        %1870 = vmatprep.subr.bf16.mxu0 0
        %1871 = vmatpush1.bf16.msra.mxu0 0
        %1872 = vmatprep.subr.bf16.mxu0 0
        %1873 = vmatpush1.bf16.msra.mxu0 0
        %1874 = vmatprep.subr.bf16.mxu0 0
        %1875 = vmatpush1.bf16.msra.mxu0 0
        %1876 = vmatprep.subr.bf16.mxu0 0
        %1877 = vmatpush1.bf16.msra.mxu0 0
        %1878 = vmatprep.subr.bf16.mxu0 0
        %1879 = vmatpush1.bf16.msra.mxu0 %v1862
        %1880 = vmatprep.subr.bf16.mxu0 0
        %1881 = vmatpush1.bf16.msra.mxu0 %v1861
        %1882 = vmatprep.subr.bf16.mxu0 0
        %1883 = vmatpush1.bf16.msra.mxu0 %v1860
        %1884 = vmatprep.subr.bf16.mxu0 0
        %1885 = vmatpush1.bf16.msra.mxu0 %v1859
        %1886 = vmatprep.subr.bf16.mxu0 0
        %1887 = vmatpush2.bf16.msra.mxu0 0
        %1888 = vmatprep.subr.bf16.mxu0 0
        %1889 = vmatpush2.bf16.msra.mxu0 0
        %1890 = vmatprep.subr.bf16.mxu0 0
        %1891 = vmatpush2.bf16.msra.mxu0 0
        %1892 = vmatprep.subr.bf16.mxu0 0
        %1893 = vmatpush2.bf16.msra.mxu0 0
        %1894 = vmatprep.subr.bf16.mxu0 0
        %1895 = vmatpush2.bf16.msra.mxu0 0
        %1896 = vmatprep.subr.bf16.mxu0 0
        %1897 = vmatpush2.bf16.msra.mxu0 0
        %1898 = vmatprep.subr.bf16.mxu0 0
        %1899 = vmatpush2.bf16.msra.mxu0 0
        %1900 = vmatprep.subr.bf16.mxu0 0
        %1901 = vmatpush2.bf16.msra.mxu0 0
        %1902 = vmatprep.mubr.bf16.mxu0 0
        %1903 = vmatmul.mubr.bf16.gmra.mxu0 %v1868
        %v1904 = vpop.f32.mrf.mxu0
        %v1905 = vadd.f32 %v1841, %v1904
        %v1906 = vpop.f32.mrf.mxu0
        %v1907 = vpop.f32.mrf.mxu0
        %v1908 = vadd.f32 %v1841, %v1907
        %v1909 = vpop.f32.mrf.mxu0
        %1910 = vdwg.mxu0
        %v1911 = vadd.f32 %v1104, %v1905
        %v1912 = vadd.f32 %v1105, %v1908
        %s1913 = scalar_lea.vmem %s9, %s1099
        %v1914 = vld [vmem:[%s1913] sm:$0x1]
        %s1915 = scalar_lea.vmem %s10, %s1099
        %v1916 = vld [vmem:[%s1915] sm:$0x1]
        %v1917 = vsel %vm1110, %v1911, 0.0
        %1918 = vadd.xlane.f32.xlu0 %v1917
        %v1919 = vpop.xlane.xlu0 %1918
        %v1920 = vsel %vm1110, %v1912, 0.0
        %1921 = vadd.xlane.f32.xlu0 %v1920
        %v1922 = vpop.xlane.xlu0 %1921
        %v1923 = vmul.f32 %v1919, %v1117
        %v1924 = vmul.f32 %v1922, %v1117
        %v1925 = vsub.f32 %v1911, %v1923
        %v1926 = vsub.f32 %v1912, %v1924
        %v1927 = vmul.f32 %v1925, %v1925
        %v1928 = vmul.f32 %v1926, %v1926
        %v1929 = vsel %vm1110, %v1927, 0.0
        %1930 = vadd.xlane.f32.xlu0 %v1929
        %v1931 = vpop.xlane.xlu0 %1930
        %v1932 = vsel %vm1110, %v1928, 0.0
        %1933 = vadd.xlane.f32.xlu0 %v1932
        %v1934 = vpop.xlane.xlu0 %1933
        %v1935 = vmul.f32 %v1931, %v1117
        %v1936 = vmul.f32 %v1934, %v1117
        %v1937 = vadd.f32 %v1935, 1e-06
        %v1938 = vadd.f32 %v1936, 1e-06
        %v1939 = vrsqrt.pop %v1937
        %v1940 = vrsqrt.pop %v1938
        %v1941 = vmul.f32 %v1925, %v1939
        %v1942 = vmul.f32 %v1926, %v1940
        %v1944 = vlaneseq
        %v1945 = vshrl.u32 %v1944, 7
        %v1946 = vsub.s32 0, %v1945
        %v1947 = vrot.slane %v1914, %v1946
        %v1949 = vmul.f32 %v1941, %v1947
        %v1950 = vmul.f32 %v1942, %v1947
        %v1952 = vlaneseq
        %v1953 = vshrl.u32 %v1952, 7
        %v1954 = vsub.s32 0, %v1953
        %v1955 = vrot.slane %v1916, %v1954
        %v1957 = vadd.f32 %v1949, %v1955
        %v1958 = vadd.f32 %v1950, %v1955
        %v1959 = vpack.c.bf16 %v1958, %v1957
        %s1960 = smul.addr %s1155, 4
        %s1961 = scalar_lea.vmem %s11, %s1960
        %v1962 = vld [vmem:[%s1961] sm:$0xff]
        %v1963 = vld [vmem:[%s1961 + $0x8] sm:$0xff]
        %v1964 = vld [vmem:[%s1961 + $0x10] sm:$0xff]
        %v1965 = vld [vmem:[%s1961 + $0x18] sm:$0xff]
        %v1966 = vld [vmem:[%s1961 + $0x20] sm:$0xff]
        %v1967 = vld [vmem:[%s1961 + $0x28] sm:$0xff]
        %v1968 = vld [vmem:[%s1961 + $0x30] sm:$0xff]
        %v1969 = vld [vmem:[%s1961 + $0x38] sm:$0xff]
        %s1970 = scalar_lea.vmem %s12, %s1166
        %v1971 = vld [vmem:[%s1970] sm:$0x3]
        %v1973 = vlaneseq
        %v1974 = vshrl.u32 %v1973, 7
        %v1975 = vsub.s32 0, %v1974
        %v1976 = vrot.slane %v1971, %v1975
        %v1977 = vlaneseq
        %v1978 = vshrl.u32 %v1977, 7
        %v1979 = vsub.s32 1, %v1978
        %v1980 = vrot.slane %v1971, %v1979
        %v1991 = vunpack.c.l.b16 %v1962
        %v1992 = vunpack.c.h.b16 %v1962
        %v1993 = vunpack.c.l.b16 %v1963
        %v1994 = vunpack.c.h.b16 %v1963
        %v1995 = vunpack.c.l.b16 %v1964
        %v1996 = vunpack.c.h.b16 %v1964
        %v1997 = vunpack.c.l.b16 %v1965
        %v1998 = vunpack.c.h.b16 %v1965
        %v1999 = vunpack.c.l.b16 %v1966
        %v2000 = vunpack.c.h.b16 %v1966
        %v2001 = vunpack.c.l.b16 %v1967
        %v2002 = vunpack.c.h.b16 %v1967
        %v2003 = vunpack.c.l.b16 %v1968
        %v2004 = vunpack.c.h.b16 %v1968
        %v2005 = vunpack.c.l.b16 %v1969
        %v2006 = vunpack.c.h.b16 %v1969
        %v2007 = vpack.c.b16 %v1993, %v1991
        %v2008 = vpack.c.b16 %v1994, %v1992
        %v2009 = vpack.c.b16 %v1997, %v1995
        %v2010 = vpack.c.b16 %v1998, %v1996
        %v2011 = vpack.c.b16 %v2001, %v1999
        %v2012 = vpack.c.b16 %v2002, %v2000
        %v2013 = vpack.c.b16 %v2005, %v2003
        %v2014 = vpack.c.b16 %v2006, %v2004
        %v2024 = vsel %vm1110, %v1959, 0
        %2026 = vmatprep.subr.bf16.mxu0 0
        %2027 = vmatpush1.bf16.msra.mxu0 0
        %2028 = vmatprep.subr.bf16.mxu0 0
        %2029 = vmatpush1.bf16.msra.mxu0 0
        %2030 = vmatprep.subr.bf16.mxu0 0
        %2031 = vmatpush1.bf16.msra.mxu0 0
        %2032 = vmatprep.subr.bf16.mxu0 0
        %2033 = vmatpush1.bf16.msra.mxu0 0
        %2034 = vmatprep.subr.bf16.mxu0 %v2014
        %2035 = vmatpush1.bf16.msra.mxu0 %v2013
        %2036 = vmatprep.subr.bf16.mxu0 %v2012
        %2037 = vmatpush1.bf16.msra.mxu0 %v2011
        %2038 = vmatprep.subr.bf16.mxu0 %v2010
        %2039 = vmatpush1.bf16.msra.mxu0 %v2009
        %2040 = vmatprep.subr.bf16.mxu0 %v2008
        %2041 = vmatpush1.bf16.msra.mxu0 %v2007
        %2042 = vmatprep.subr.bf16.mxu0 0
        %2043 = vmatpush2.bf16.msra.mxu0 0
        %2044 = vmatprep.subr.bf16.mxu0 0
        %2045 = vmatpush2.bf16.msra.mxu0 0
        %2046 = vmatprep.subr.bf16.mxu0 0
        %2047 = vmatpush2.bf16.msra.mxu0 0
        %2048 = vmatprep.subr.bf16.mxu0 0
        %2049 = vmatpush2.bf16.msra.mxu0 0
        %2050 = vmatprep.subr.bf16.mxu0 0
        %2051 = vmatpush2.bf16.msra.mxu0 0
        %2052 = vmatprep.subr.bf16.mxu0 0
        %2053 = vmatpush2.bf16.msra.mxu0 0
        %2054 = vmatprep.subr.bf16.mxu0 0
        %2055 = vmatpush2.bf16.msra.mxu0 0
        %2056 = vmatprep.subr.bf16.mxu0 0
        %2057 = vmatpush2.bf16.msra.mxu0 0
        %2058 = vmatprep.mubr.bf16.mxu0 0
        %2059 = vmatmul.mubr.bf16.gmra.mxu0 %v2024
        %v2060 = vpop.f32.mrf.mxu0
        %v2061 = vadd.f32 %v1976, %v2060
        %v2062 = vpop.f32.mrf.mxu0
        %v2063 = vadd.f32 %v1980, %v2062
        %v2064 = vpop.f32.mrf.mxu0
        %v2065 = vadd.f32 %v1976, %v2064
        %v2066 = vpop.f32.mrf.mxu0
        %v2067 = vadd.f32 %v1980, %v2066
        %2068 = vdwg.mxu0
        %v2069 = vmul.f32 %v2061, %v2061
        %v2070 = vmul.f32 %v2063, %v2063
        %v2071 = vmul.f32 %v2065, %v2065
        %v2072 = vmul.f32 %v2067, %v2067
        %v2073 = vmul.f32 %v2061, %v2069
        %v2074 = vmul.f32 %v2063, %v2070
        %v2075 = vmul.f32 %v2065, %v2071
        %v2076 = vmul.f32 %v2067, %v2072
        %v2077 = vmul.f32 %v2073, 0.044715
        %v2078 = vmul.f32 %v2074, 0.044715
        %v2079 = vmul.f32 %v2075, 0.044715
        %v2080 = vmul.f32 %v2076, 0.044715
        %v2081 = vadd.f32 %v2061, %v2077
        %v2082 = vadd.f32 %v2063, %v2078
        %v2083 = vadd.f32 %v2065, %v2079
        %v2084 = vadd.f32 %v2067, %v2080
        %v2085 = vmul.f32 %v2081, 0.7978846
        %v2086 = vmul.f32 %v2082, 0.7978846
        %v2087 = vmul.f32 %v2083, 0.7978846
        %v2088 = vmul.f32 %v2084, 0.7978846
        %v2089 = vtanh.pop %v2085
        %v2090 = vtanh.pop %v2086
        %v2091 = vtanh.pop %v2087
        %v2092 = vtanh.pop %v2088
        %v2093 = vadd.f32 %v2089, 1.0
        %v2094 = vadd.f32 %v2090, 1.0
        %v2095 = vadd.f32 %v2091, 1.0
        %v2096 = vadd.f32 %v2092, 1.0
        %v2097 = vmul.f32 %v2093, 0.5
        %v2098 = vmul.f32 %v2094, 0.5
        %v2099 = vmul.f32 %v2095, 0.5
        %v2100 = vmul.f32 %v2096, 0.5
        %v2101 = vmul.f32 %v2061, %v2097
        %v2102 = vmul.f32 %v2063, %v2098
        %v2103 = vmul.f32 %v2065, %v2099
        %v2104 = vmul.f32 %v2067, %v2100
        %v2105 = vpack.c.bf16 %v2103, %v2101
        %v2106 = vpack.c.bf16 %v2104, %v2102
        %s2107 = smul.u32 %s1099, 32
        %s2108 = smul.addr %s2107, 4
        %s2109 = scalar_lea.vmem %s13, %s2108
        %v2110 = vld [vmem:[%s2109] sm:$0xf]
        %v2111 = vld [vmem:[%s2109 + $0x4] sm:$0xf]
        %v2112 = vld [vmem:[%s2109 + $0x8] sm:$0xf]
        %v2113 = vld [vmem:[%s2109 + $0xc] sm:$0xf]
        %v2114 = vld [vmem:[%s2109 + $0x10] sm:$0xf]
        %v2115 = vld [vmem:[%s2109 + $0x14] sm:$0xf]
        %v2116 = vld [vmem:[%s2109 + $0x18] sm:$0xf]
        %v2117 = vld [vmem:[%s2109 + $0x1c] sm:$0xf]
        %v2118 = vld [vmem:[%s2109 + $0x20] sm:$0xf]
        %v2119 = vld [vmem:[%s2109 + $0x24] sm:$0xf]
        %v2120 = vld [vmem:[%s2109 + $0x28] sm:$0xf]
        %v2121 = vld [vmem:[%s2109 + $0x2c] sm:$0xf]
        %v2122 = vld [vmem:[%s2109 + $0x30] sm:$0xf]
        %v2123 = vld [vmem:[%s2109 + $0x34] sm:$0xf]
        %v2124 = vld [vmem:[%s2109 + $0x38] sm:$0xf]
        %v2125 = vld [vmem:[%s2109 + $0x3c] sm:$0xf]
        %v2126 = vld [vmem:[%s2109 + $0x40] sm:$0xf]
        %v2127 = vld [vmem:[%s2109 + $0x44] sm:$0xf]
        %v2128 = vld [vmem:[%s2109 + $0x48] sm:$0xf]
        %v2129 = vld [vmem:[%s2109 + $0x4c] sm:$0xf]
        %v2130 = vld [vmem:[%s2109 + $0x50] sm:$0xf]
        %v2131 = vld [vmem:[%s2109 + $0x54] sm:$0xf]
        %v2132 = vld [vmem:[%s2109 + $0x58] sm:$0xf]
        %v2133 = vld [vmem:[%s2109 + $0x5c] sm:$0xf]
        %v2134 = vld [vmem:[%s2109 + $0x60] sm:$0xf]
        %v2135 = vld [vmem:[%s2109 + $0x64] sm:$0xf]
        %v2136 = vld [vmem:[%s2109 + $0x68] sm:$0xf]
        %v2137 = vld [vmem:[%s2109 + $0x6c] sm:$0xf]
        %v2138 = vld [vmem:[%s2109 + $0x70] sm:$0xf]
        %v2139 = vld [vmem:[%s2109 + $0x74] sm:$0xf]
        %v2140 = vld [vmem:[%s2109 + $0x78] sm:$0xf]
        %v2141 = vld [vmem:[%s2109 + $0x7c] sm:$0xf]
        %s2142 = scalar_lea.vmem %s14, %s1099
        %v2143 = vld [vmem:[%s2142] sm:$0x1]
        %v2145 = vlaneseq
        %v2146 = vshrl.u32 %v2145, 7
        %v2147 = vsub.s32 0, %v2146
        %v2148 = vrot.slane %v2143, %v2147
        %v2182 = vunpack.c.l.b16 %v2110
        %v2183 = vunpack.c.l.b16 %v2111
        %v2184 = vunpack.c.l.b16 %v2112
        %v2185 = vunpack.c.l.b16 %v2113
        %v2186 = vunpack.c.l.b16 %v2114
        %v2187 = vunpack.c.l.b16 %v2115
        %v2188 = vunpack.c.l.b16 %v2116
        %v2189 = vunpack.c.l.b16 %v2117
        %v2190 = vunpack.c.l.b16 %v2118
        %v2191 = vunpack.c.l.b16 %v2119
        %v2192 = vunpack.c.l.b16 %v2120
        %v2193 = vunpack.c.l.b16 %v2121
        %v2194 = vunpack.c.l.b16 %v2122
        %v2195 = vunpack.c.l.b16 %v2123
        %v2196 = vunpack.c.l.b16 %v2124
        %v2197 = vunpack.c.l.b16 %v2125
        %v2198 = vunpack.c.l.b16 %v2126
        %v2199 = vunpack.c.l.b16 %v2127
        %v2200 = vunpack.c.l.b16 %v2128
        %v2201 = vunpack.c.l.b16 %v2129
        %v2202 = vunpack.c.l.b16 %v2130
        %v2203 = vunpack.c.l.b16 %v2131
        %v2204 = vunpack.c.l.b16 %v2132
        %v2205 = vunpack.c.l.b16 %v2133
        %v2206 = vunpack.c.l.b16 %v2134
        %v2207 = vunpack.c.l.b16 %v2135
        %v2208 = vunpack.c.l.b16 %v2136
        %v2209 = vunpack.c.l.b16 %v2137
        %v2210 = vunpack.c.l.b16 %v2138
        %v2211 = vunpack.c.l.b16 %v2139
        %v2212 = vunpack.c.l.b16 %v2140
        %v2213 = vunpack.c.l.b16 %v2141
        %v2214 = vpack.c.b16 %v2183, %v2182
        %v2215 = vpack.c.b16 %v2185, %v2184
        %v2216 = vpack.c.b16 %v2187, %v2186
        %v2217 = vpack.c.b16 %v2189, %v2188
        %v2218 = vpack.c.b16 %v2191, %v2190
        %v2219 = vpack.c.b16 %v2193, %v2192
        %v2220 = vpack.c.b16 %v2195, %v2194
        %v2221 = vpack.c.b16 %v2197, %v2196
        %v2222 = vpack.c.b16 %v2199, %v2198
        %v2223 = vpack.c.b16 %v2201, %v2200
        %v2224 = vpack.c.b16 %v2203, %v2202
        %v2225 = vpack.c.b16 %v2205, %v2204
        %v2226 = vpack.c.b16 %v2207, %v2206
        %v2227 = vpack.c.b16 %v2209, %v2208
        %v2228 = vpack.c.b16 %v2211, %v2210
        %v2229 = vpack.c.b16 %v2213, %v2212
        %2246 = vmatprep.subr.bf16.mxu0 0
        %2247 = vmatpush1.bf16.msra.mxu0 %v2221
        %2248 = vmatprep.subr.bf16.mxu0 0
        %2249 = vmatpush1.bf16.msra.mxu0 %v2220
        %2250 = vmatprep.subr.bf16.mxu0 0
        %2251 = vmatpush1.bf16.msra.mxu0 %v2219
        %2252 = vmatprep.subr.bf16.mxu0 0
        %2253 = vmatpush1.bf16.msra.mxu0 %v2218
        %2254 = vmatprep.subr.bf16.mxu0 0
        %2255 = vmatpush1.bf16.msra.mxu0 %v2217
        %2256 = vmatprep.subr.bf16.mxu0 0
        %2257 = vmatpush1.bf16.msra.mxu0 %v2216
        %2258 = vmatprep.subr.bf16.mxu0 0
        %2259 = vmatpush1.bf16.msra.mxu0 %v2215
        %2260 = vmatprep.subr.bf16.mxu0 0
        %2261 = vmatpush1.bf16.msra.mxu0 %v2214
        %2262 = vmatprep.subr.bf16.mxu0 0
        %2263 = vmatpush2.bf16.msra.mxu0 %v2229
        %2264 = vmatprep.subr.bf16.mxu0 0
        %2265 = vmatpush2.bf16.msra.mxu0 %v2228
        %2266 = vmatprep.subr.bf16.mxu0 0
        %2267 = vmatpush2.bf16.msra.mxu0 %v2227
        %2268 = vmatprep.subr.bf16.mxu0 0
        %2269 = vmatpush2.bf16.msra.mxu0 %v2226
        %2270 = vmatprep.subr.bf16.mxu0 0
        %2271 = vmatpush2.bf16.msra.mxu0 %v2225
        %2272 = vmatprep.subr.bf16.mxu0 0
        %2273 = vmatpush2.bf16.msra.mxu0 %v2224
        %2274 = vmatprep.subr.bf16.mxu0 0
        %2275 = vmatpush2.bf16.msra.mxu0 %v2223
        %2276 = vmatprep.subr.bf16.mxu0 0
        %2277 = vmatpush2.bf16.msra.mxu0 %v2222
        %2278 = vmatprep.mubr.bf16.mxu0 %v2106
        %2279 = vmatmul.mubr.bf16.gmra.mxu0 %v2105
        %v2280 = vpop.f32.mrf.mxu0
        %v2281 = vadd.f32 %v2148, %v2280
        %v2282 = vpop.f32.mrf.mxu0
        %v2283 = vpop.f32.mrf.mxu0
        %v2284 = vadd.f32 %v2148, %v2283
        %v2285 = vpop.f32.mrf.mxu0
        %2286 = vdwg.mxu0
        %v2287 = vadd.f32 %v1911, %v2281
        %v2288 = vadd.f32 %v1912, %v2284
      $region93: #{featformer_forward.1} parent=87 // loop_footer
        %s1103 = sadd.s32 1, %s1099
      $region94: #{featformer_forward.1} parent=87 // loop_footer_branch
        %1098 = sbr.rel target = $region90
      $region95: #{featformer_forward.1} parent=87 // loop_exit
        _
      %vm2289 = vcmask 523264
      %v2290 = vsel %vm2289, %v1104, 0.0
      %v2291 = vsel %vm2289, %v1105, 0.0
      %v2292 = vadd.f32 %v2290, %v2291
      %v2293 = vrot.slane %v2292, 4
      %v2294 = vadd.f32 %v2292, %v2293
      %v2295 = vrot.slane %v2294, 2
      %v2296 = vadd.f32 %v2294, %v2295
      %v2297 = vrot.slane %v2296, 1
      %v2298 = vadd.f32 %v2296, %v2297
      %v2299 = vrcp.pop 16.0
      %v2300 = vmul.f32 %v2298, %v2299
      %v2301 = vpack.c.bf16 %v2300, %v2300
      %v2302 = vld [vmem:[%s15] sm:$0xf]
      %v2303 = vld [vmem:[%s15 + $0x4] sm:$0xf]
      %v2304 = vld [vmem:[%s15 + $0x8] sm:$0xf]
      %v2305 = vld [vmem:[%s15 + $0xc] sm:$0xf]
      %v2306 = vld [vmem:[%s15 + $0x10] sm:$0xf]
      %v2307 = vld [vmem:[%s15 + $0x14] sm:$0xf]
      %v2308 = vld [vmem:[%s15 + $0x18] sm:$0xf]
      %v2309 = vld [vmem:[%s15 + $0x1c] sm:$0xf]
      %v2310 = vld [vmem:[%s16] sm:$0x1]
      %v2319 = vunpack.c.l.b16 %v2302
      %v2320 = vunpack.c.l.b16 %v2303
      %v2321 = vunpack.c.l.b16 %v2304
      %v2322 = vunpack.c.l.b16 %v2305
      %v2323 = vunpack.c.l.b16 %v2306
      %v2324 = vunpack.c.l.b16 %v2307
      %v2325 = vunpack.c.l.b16 %v2308
      %v2326 = vunpack.c.l.b16 %v2309
      %v2327 = vpack.c.b16 %v2320, %v2319
      %v2328 = vpack.c.b16 %v2322, %v2321
      %v2329 = vpack.c.b16 %v2324, %v2323
      %v2330 = vpack.c.b16 %v2326, %v2325
      %v2336 = vsel %vm2289, %v2301, 0
      %2338 = vmatprep.subr.bf16.mxu0 0
      %2339 = vmatpush1.bf16.msra.mxu0 0
      %2340 = vmatprep.subr.bf16.mxu0 0
      %2341 = vmatpush1.bf16.msra.mxu0 0
      %2342 = vmatprep.subr.bf16.mxu0 0
      %2343 = vmatpush1.bf16.msra.mxu0 0
      %2344 = vmatprep.subr.bf16.mxu0 0
      %2345 = vmatpush1.bf16.msra.mxu0 0
      %2346 = vmatprep.subr.bf16.mxu0 0
      %2347 = vmatpush1.bf16.msra.mxu0 %v2330
      %2348 = vmatprep.subr.bf16.mxu0 0
      %2349 = vmatpush1.bf16.msra.mxu0 %v2329
      %2350 = vmatprep.subr.bf16.mxu0 0
      %2351 = vmatpush1.bf16.msra.mxu0 %v2328
      %2352 = vmatprep.subr.bf16.mxu0 0
      %2353 = vmatpush1.bf16.msra.mxu0 %v2327
      %2354 = vmatprep.subr.bf16.mxu0 0
      %2355 = vmatpush2.bf16.msra.mxu0 0
      %2356 = vmatprep.subr.bf16.mxu0 0
      %2357 = vmatpush2.bf16.msra.mxu0 0
      %2358 = vmatprep.subr.bf16.mxu0 0
      %2359 = vmatpush2.bf16.msra.mxu0 0
      %2360 = vmatprep.subr.bf16.mxu0 0
      %2361 = vmatpush2.bf16.msra.mxu0 0
      %2362 = vmatprep.subr.bf16.mxu0 0
      %2363 = vmatpush2.bf16.msra.mxu0 0
      %2364 = vmatprep.subr.bf16.mxu0 0
      %2365 = vmatpush2.bf16.msra.mxu0 0
      %2366 = vmatprep.subr.bf16.mxu0 0
      %2367 = vmatpush2.bf16.msra.mxu0 0
      %2368 = vmatprep.subr.bf16.mxu0 0
      %2369 = vmatpush2.bf16.msra.mxu0 0
      %2370 = vmatprep.mubr.bf16.mxu0 0
      %2371 = vmatmul.mubr.bf16.gmra.mxu0 %v2336
      %v2372 = vpop.f32.mrf.mxu0
      %v2373 = vadd.f32 %v2310, %v2372
      %v2374 = vpop.f32.mrf.mxu0
      %v2375 = vpop.f32.mrf.mxu0
      %v2376 = vpop.f32.mrf.mxu0
      %2377 = vdwg.mxu0
      %v2378 = vlaneseq
      %v2379 = vshrl.u32 %v2378, 7
      %v2380 = vsub.s32 0, %v2379
      %v2381 = vrot.slane %v2373, %v2380
      %2382 = vst [vmem:[%s546] sm:$0xff] %v2381
      %p2383 = scmp.lt.s32.totalorder %s28, 1
      %s2384 = scalar_select %p2383, %s28, 1
      %s2385 = smul.addr %s2384, 8
      %s2386 = scalar_lea.vmem %s17, %s2385
      // Predicated region
      $region96: #{featformer_forward.1} parent=87 // pred_check
        %p2387 = pneg %p408
      $region97: #{featformer_forward.1} parent=87 // pred_check_branch
        %2389 = sbr.rel (%p2387) target = $region99
      $region98: #{featformer_forward.1} parent=87 // pred_region
        _
      $region99: #{featformer_forward.1} parent=87 // pred_fallthru
        _
    $region88: #{featformer_forward.1} parent=5 // pred_fallthru
      _
    %p2390 = scmp.le.s32.totalorder 2, %s23
    // Predicated region
    $region100: #{featformer_forward.1} parent=5 // pred_check
      %p2391 = pneg %p2390
    $region101: #{featformer_forward.1} parent=5 // pred_check_branch
      %2393 = sbr.rel (%p2391) target = $region103
    $region102: #{featformer_forward.1} parent=5 // pred_region
      %s2394 = ssub.s32 %s23, 2
      // Predicated region
      $region104: #{featformer_forward.1} parent=102 // pred_check
        %p2395 = pneg %p414
      $region105: #{featformer_forward.1} parent=102 // pred_check_branch
        %2397 = sbr.rel (%p2395) target = $region107
      $region106: #{featformer_forward.1} parent=102 // pred_region
        %p2398 = scmp.lt.s32.totalorder %s29, 1
        %s2399 = scalar_select %p2398, %s29, 1
        %s2400 = smul.addr %s2399, 8
        %s2401 = scalar_lea.vmem %s17, %s2400
      $region107: #{featformer_forward.1} parent=102 // pred_fallthru
        _
    $region103: #{featformer_forward.1} parent=5 // pred_fallthru
      _
  $region6: #{featformer_forward.1} parent=0 // loop_footer
    %s27 = sadd.s32 1, %s23
  $region7: #{featformer_forward.1} parent=0 // loop_footer_branch
    %22 = sbr.rel target = $region3
  $region8: #{featformer_forward.1} parent=0 // loop_exit
    _

</llo_original>
